<compile_context>
chip_gen: v6e
topology: v6e:2x2x1
jax: 0.10.0
libtpu: 0.0.40
codegen_flags: <defaults>
</compile_context>

<pallas_src>
import functools
import numpy as np

import jax
import jax.numpy as jnp
from jax import lax
from jax.experimental import pallas as pl
from jax.experimental.pallas import tpu as pltpu


# ----------------------------------------------------------------------------------
# small helpers (glue)
# ----------------------------------------------------------------------------------
def leb_shuffle_2n(n):
    if n == 1:
        return np.array([0], dtype=int)
    prev = leb_shuffle_2n(n // 2)
    ans = np.zeros(n, dtype=int)
    ans[::2] = prev
    ans[1::2] = n - 1 - prev
    return ans


_BINOM = np.array([[1., 2., 1.], [2., 4., 2.], [1., 2., 1.]], dtype=np.float32)


def down(x):
    """F.conv2d(x, binom/16, stride=2, padding=1) in NCHW (C=1)."""
    if jnp.iscomplexobj(x):
        return (down(jnp.real(x)) + 1j * down(jnp.imag(x))).astype(x.dtype)
    w = jnp.asarray(_BINOM / 16.0).reshape(1, 1, 3, 3).astype(x.dtype)
    return lax.conv_general_dilated(x, w, window_strides=(2, 2), padding=((1, 1), (1, 1)),
                                    dimension_numbers=('NCHW', 'OIHW', 'NCHW'))


def up(x):
    """F.conv_transpose2d(x, binom/4, stride=2, padding=1, output_padding=1)."""
    if jnp.iscomplexobj(x):
        return (up(jnp.real(x)) + 1j * up(jnp.imag(x))).astype(x.dtype)
    w = jnp.asarray(_BINOM / 4.0).reshape(1, 1, 3, 3).astype(x.dtype)
    return lax.conv_general_dilated(x, w, window_strides=(1, 1), padding=((1, 2), (1, 2)),
                                    lhs_dilation=(2, 2),
                                    dimension_numbers=('NCHW', 'OIHW', 'NCHW'))


def absorbing_layer(gamma_val, kappa2d, pad, ABLamp, NeumannAtFirstDim=False):
    kT = kappa2d.T
    n0, n1 = kT.shape
    g = gamma_val * ABLamp * jnp.ones_like(kT)
    b_bwd1 = (jnp.arange(pad[0], 0, -1) ** 2 / pad[0] ** 2).astype(g.dtype)
    b_bwd2 = (jnp.arange(pad[1], 0, -1) ** 2 / pad[1] ** 2).astype(g.dtype)
    b_fwd1 = (jnp.arange(1, pad[0] + 1) ** 2 / pad[0] ** 2).astype(g.dtype)
    b_fwd2 = (jnp.arange(1, pad[1] + 1) ** 2 / pad[1] ** 2).astype(g.dtype)
    ones0 = jnp.ones((n0,), g.dtype)
    ones1 = jnp.ones((n1,), g.dtype)
    if not NeumannAtFirstDim:
        g = g.at[:, :pad[1]].add(jnp.outer(ones0, b_bwd2) * ABLamp)
        g = g.at[:pad[0], :pad[1]].add(-jnp.outer(b_bwd1, b_bwd2) * ABLamp)
        g = g.at[n0 - pad[0]:, :pad[1]].add(-jnp.outer(b_fwd1, b_bwd2) * ABLamp)
    g = g.at[:, n1 - pad[1]:].add(jnp.outer(ones0, b_fwd2) * ABLamp)
    g = g.at[:pad[0], :].add(jnp.outer(b_bwd1, ones1) * ABLamp)
    g = g.at[n0 - pad[0]:, :].add(jnp.outer(b_fwd1, ones1) * ABLamp)
    g = g.at[:pad[0], n1 - pad[1]:].add(-jnp.outer(b_bwd1, b_fwd2) * ABLamp)
    g = g.at[n0 - pad[0]:, n1 - pad[1]:].add(-jnp.outer(b_fwd1, b_fwd2) * ABLamp)
    return g.T[None, None]


def get_grid2D(shape):
    batchsize, size_x, size_y = shape[0], shape[2], shape[3]
    if size_x == size_y:
        x = np.linspace(0, 1, size_y, endpoint=True, dtype=np.float32)
    else:
        x = np.linspace(0, 3, size_y, endpoint=True, dtype=np.float32)
    y = np.linspace(0, 1, size_x, endpoint=True, dtype=np.float32)
    X, Y = np.meshgrid(x, y)
    gridx = jnp.broadcast_to(jnp.asarray(X)[None, None], (batchsize, 1, size_x, size_y))
    gridy = jnp.broadcast_to(jnp.asarray(Y)[None, None], (batchsize, 1, size_x, size_y))
    return gridx, gridy


# ----------------------------------------------------------------------------------
# shared stencil math (used by the Pallas kernels AND by the XLA fallback that runs
# the coarse multigrid levels where the lane axis would be < 128 wide)
# ----------------------------------------------------------------------------------
def _xla_shifts(x):
    """Zero-padded nearest-neighbour shifts for a (B, H, W) batch of planes."""
    zr = jnp.zeros_like(x[:, :1, :])
    zc = jnp.zeros_like(x[:, :, :1])
    up_ = jnp.concatenate([zr, x[:, :-1, :]], axis=1)     # x[i-1, j]
    dn_ = jnp.concatenate([x[:, 1:, :], zr], axis=1)      # x[i+1, j]
    lf_ = jnp.concatenate([zc, x[:, :, :-1]], axis=2)     # x[i, j-1]
    rt_ = jnp.concatenate([x[:, :, 1:], zc], axis=2)      # x[i, j+1]
    return up_, dn_, lf_, rt_


def _kernel_shifts(H, W):
    """Shift helper for one (H, W) plane inside a Pallas kernel.

    0/1 float boundary masks are built ONCE per kernel invocation (outside any unrolled
    iteration loop) and reused by every plane and every stencil application; each shift
    is an XLU roll plus a single VALU multiply (no per-shift select).
    """
    row = lax.broadcasted_iota(jnp.int32, (H, W), 0)
    col = lax.broadcasted_iota(jnp.int32, (H, W), 1)
    m_up = (row > 0).astype(jnp.float32)
    m_dn = (row < H - 1).astype(jnp.float32)
    m_lf = (col > 0).astype(jnp.float32)
    m_rt = (col < W - 1).astype(jnp.float32)

    def sh(x):
        up_ = m_up * jnp.roll(x, 1, axis=0)
        dn_ = m_dn * jnp.roll(x, -1, axis=0)
        lf_ = m_lf * jnp.roll(x, 1, axis=1)
        rt_ = m_rt * jnp.roll(x, -1, axis=1)
        return up_, dn_, lf_, rt_

    return sh


def _Ax(xr, xi, mr, mi, sh, inv_h2, msign=1.0):
    """(Lap - M) x with M = mr + i*msign*mi on split re/im planes."""
    u, d, l, r = sh(xr)
    tr = inv_h2 * (4.0 * xr - u - d - l - r) - (mr * xr - msign * (mi * xi))
    u, d, l, r = sh(xi)
    ti = inv_h2 * (4.0 * xi - u - d - l - r) - (mr * xi + msign * (mi * xr))
    return tr, ti


def _adr_math(xr, xi, tx, ty, lt, kp, gm, sh, inv_h2, w_over_h, om2, omega):
    """Upwind advection-diffusion-reaction stencil; coefficients derived in place."""
    atx, aty = jnp.abs(tx), jnp.abs(ty)
    c2 = -ty - aty
    c4 = -tx - atx
    c6 = tx - atx
    c8 = ty - aty
    c5 = 2.0 * (atx + aty)
    k2 = kp * kp
    Rr = (tx * tx + ty * ty - k2) * om2
    Ri = omega * (gm * k2 + lt)
    ur, dr, lf_r, rt_r = sh(xr)
    ui, di, lf_i, rt_i = sh(xi)
    lap_r = inv_h2 * (4.0 * xr - ur - dr - lf_r - rt_r)
    lap_i = inv_h2 * (4.0 * xi - ui - di - lf_i - rt_i)
    s_r = c2 * ur + c4 * lf_r + c5 * xr + c6 * rt_r + c8 * dr
    s_i = c2 * ui + c4 * lf_i + c5 * xi + c6 * rt_i + c8 * di
    yr = lap_r - w_over_h * s_i + (Rr * xr - Ri * xi)
    yi = lap_i + w_over_h * s_r + (Rr * xi + Ri * xr)
    return yr, yi


# ----------------------------------------------------------------------------------
# Pallas kernel bodies
# ----------------------------------------------------------------------------------
def _helm_matvec_kernel(xr_ref, xi_ref, mr_ref, mi_ref, yr_ref, yi_ref, *, inv_h2, msign):
    H, W = xr_ref.shape[1], xr_ref.shape[2]
    sh = _kernel_shifts(H, W)
    yr, yi = _Ax(xr_ref[0], xi_ref[0], mr_ref[0], mi_ref[0], sh, inv_h2, msign)
    yr_ref[0] = yr
    yi_ref[0] = yi


def _cheby_sweep_kernel(taus_ref, xr_ref, xi_ref, br_ref, bi_ref, mr_ref, mi_ref,
                        oxr_ref, oxi_ref, *, inv_h2, max_iter):
    # Fused Chebyshev sweep: b <- A^H b once, then max_iter iterations of
    # x <- x + tau[i, batch] * (b - A^H A x) with everything VMEM-resident.
    H, W = xr_ref.shape[1], xr_ref.shape[2]
    sh = _kernel_shifts(H, W)
    b = pl.program_id(0)
    mr, mi = mr_ref[0], mi_ref[0]
    bcr, bci = _Ax(br_ref[0], bi_ref[0], mr, mi, sh, inv_h2, -1.0)   # A^H b
    xr, xi = xr_ref[0], xi_ref[0]
    for i in range(max_iter):                       # fully unrolled (static trip count)
        tr, ti = _Ax(xr, xi, mr, mi, sh, inv_h2, 1.0)
        nr, ni = _Ax(tr, ti, mr, mi, sh, inv_h2, -1.0)
        tau = taus_ref[i, b]
        xr = xr + tau * (bcr - nr)
        xi = xi + tau * (bci - ni)
    oxr_ref[0] = xr
    oxi_ref[0] = xi


def _jacobi_sweep_kernel(xr_ref, xi_ref, br_ref, bi_ref, mr_ref, mi_ref,
                         oxr_ref, oxi_ref, *, inv_h2, w, max_iter):
    # Fused damped-Jacobi sweep (SL=False): x <- x + w * (b - A x) / (D - Re(M)), D = 4/h^2.
    H, W = xr_ref.shape[1], xr_ref.shape[2]
    sh = _kernel_shifts(H, W)
    mr, mi = mr_ref[0], mi_ref[0]
    br, bi = br_ref[0], bi_ref[0]
    wdinv = w / (4.0 * inv_h2 - mr)                 # hoisted out of the iteration loop
    xr, xi = xr_ref[0], xi_ref[0]
    for _ in range(max_iter):
        tr, ti = _Ax(xr, xi, mr, mi, sh, inv_h2, 1.0)
        xr = xr + wdinv * (br - tr)
        xi = xi + wdinv * (bi - ti)
    oxr_ref[0] = xr
    oxi_ref[0] = xi


def _power_step_kernel(scale_ref, xr_ref, xi_ref, mr_ref, mi_ref,
                       yr_ref, yi_ref, nsq_ref, *, inv_h2):
    # y = A^H A (s * x)  with s = 1/||previous result|| folded in (SMEM scalar),
    # plus the per-batch ||y||^2 partial sum so no separate reduce/rescale HBM passes.
    H, W = xr_ref.shape[1], xr_ref.shape[2]
    sh = _kernel_shifts(H, W)
    s = scale_ref[0]
    mr, mi = mr_ref[0], mi_ref[0]
    tr, ti = _Ax(xr_ref[0] * s, xi_ref[0] * s, mr, mi, sh, inv_h2, 1.0)
    nr, ni = _Ax(tr, ti, mr, mi, sh, inv_h2, -1.0)
    yr_ref[0] = nr
    yi_ref[0] = ni
    nsq_ref[...] = jnp.reshape(jnp.sum(nr * nr) + jnp.sum(ni * ni), (1, 1, 1))


def _adr_kernel(xr_ref, xi_ref, tx_ref, ty_ref, lt_ref, kp_ref, gm_ref,
                yr_ref, yi_ref, *, inv_h2, w_over_h, om2, omega):
    H, W = xr_ref.shape[1], xr_ref.shape[2]
    sh = _kernel_shifts(H, W)
    yr, yi = _adr_math(xr_ref[0], xi_ref[0], tx_ref[0], ty_ref[0], lt_ref[0],
                       kp_ref[0], gm_ref[0], sh, inv_h2, w_over_h, om2, omega)
    yr_ref[0] = yr
    yi_ref[0] = yi


# ----------------------------------------------------------------------------------
# op factories (Pallas on lane-dense levels, shared XLA math on coarse levels)
# ----------------------------------------------------------------------------------
@functools.lru_cache(maxsize=None)
def _vmem_limit_bytes():
    # Generation-aware scoped-VMEM limit: ~3/4 of physical, capped at 100 MiB
    # (v7x: ~48 MiB, v5e/v6e: ~96 MiB).  Falls back to the always-safe 32 MiB.
    limit = 32 * 1024 * 1024
    try:
        phys = int(pltpu.get_tpu_info().vmem_capacity_bytes)
        limit = max(limit, min(phys * 3 // 4, 100 * 1024 * 1024))
    except Exception:
        pass
    return int(limit)


def _cparams():
    return pltpu.CompilerParams(dimension_semantics=("parallel",),
                                vmem_limit_bytes=_vmem_limit_bytes())


def _use_pallas(H, W):
    # Coarse multigrid levels (lane axis < 128) would run masked partial stores at low
    # lane utilization; keep those in plain XLA, use Pallas on the fine levels.
    return W >= 128 and H >= 8


def _plane_spec(H, W):
    return pl.BlockSpec((1, H, W), lambda b: (b, 0, 0))


def _smem_spec():
    return pl.BlockSpec(memory_space=pltpu.MemorySpace.SMEM)


def _out2(B, H, W):
    return (jax.ShapeDtypeStruct((B, H, W), jnp.float32),) * 2


@functools.lru_cache(maxsize=None)
def _matvec_fn(B, H, W, inv_h2, msign):
    if _use_pallas(H, W):
        p = _plane_spec(H, W)
        return pl.pallas_call(
            functools.partial(_helm_matvec_kernel, inv_h2=inv_h2, msign=msign),
            grid=(B,), in_specs=[p] * 4, out_specs=(p, p), out_shape=_out2(B, H, W),
            compiler_params=_cparams())

    def f(xr, xi, mr, mi):
        return _Ax(xr, xi, mr, mi, _xla_shifts, inv_h2, msign)
    return f


@functools.lru_cache(maxsize=None)
def _cheby_sweep_fn(B, H, W, inv_h2, max_iter):
    if _use_pallas(H, W):
        p = _plane_spec(H, W)
        return pl.pallas_call(
            functools.partial(_cheby_sweep_kernel, inv_h2=inv_h2, max_iter=max_iter),
            grid=(B,), in_specs=[_smem_spec()] + [p] * 6, out_specs=(p, p),
            out_shape=_out2(B, H, W),
            input_output_aliases={1: 0, 2: 1},     # x re/im updated in place
            compiler_params=_cparams())

    def f(taus_seq, xr, xi, br, bi, mr, mi):
        bcr, bci = _Ax(br, bi, mr, mi, _xla_shifts, inv_h2, -1.0)

        def body(i, c):
            tau = lax.dynamic_index_in_dim(taus_seq, i, 0, keepdims=False)[:, None, None]
            tr, ti = _Ax(c[0], c[1], mr, mi, _xla_shifts, inv_h2, 1.0)
            nr, ni = _Ax(tr, ti, mr, mi, _xla_shifts, inv_h2, -1.0)
            return c[0] + tau * (bcr - nr), c[1] + tau * (bci - ni)
        return lax.fori_loop(0, max_iter, body, (xr, xi))
    return f


@functools.lru_cache(maxsize=None)
def _jacobi_sweep_fn(B, H, W, inv_h2, w, max_iter):
    if _use_pallas(H, W):
        p = _plane_spec(H, W)
        return pl.pallas_call(
            functools.partial(_jacobi_sweep_kernel, inv_h2=inv_h2, w=w, max_iter=max_iter),
            grid=(B,), in_specs=[p] * 6, out_specs=(p, p), out_shape=_out2(B, H, W),
            input_output_aliases={0: 0, 1: 1},     # x re/im updated in place
            compiler_params=_cparams())

    def f(xr, xi, br, bi, mr, mi):
        wdinv = w / (4.0 * inv_h2 - mr)

        def body(_, c):
            tr, ti = _Ax(c[0], c[1], mr, mi, _xla_shifts, inv_h2, 1.0)
            return c[0] + wdinv * (br - tr), c[1] + wdinv * (bi - ti)
        return lax.fori_loop(0, max_iter, body, (xr, xi))
    return f


@functools.lru_cache(maxsize=None)
def _power_step_fn(B, H, W, inv_h2):
    if _use_pallas(H, W):
        p = _plane_spec(H, W)
        nspec = pl.BlockSpec((1, 1, 1), lambda b: (b, 0, 0))
        return pl.pallas_call(
            functools.partial(_power_step_kernel, inv_h2=inv_h2),
            grid=(B,), in_specs=[_smem_spec()] + [p] * 4,
            out_specs=(p, p, nspec),
            out_shape=(jax.ShapeDtypeStruct((B, H, W), jnp.float32),
                       jax.ShapeDtypeStruct((B, H, W), jnp.float32),
                       jax.ShapeDtypeStruct((B, 1, 1), jnp.float32)),
            compiler_params=_cparams())

    def f(inv_s, xr, xi, mr, mi):
        s = inv_s[0]
        tr, ti = _Ax(xr * s, xi * s, mr, mi, _xla_shifts, inv_h2, 1.0)
        nr, ni = _Ax(tr, ti, mr, mi, _xla_shifts, inv_h2, -1.0)
        nsq = (jnp.sum(nr * nr, axis=(1, 2), keepdims=True)
               + jnp.sum(ni * ni, axis=(1, 2), keepdims=True))
        return nr, ni, nsq
    return f


def _split(x, B, H, W):
    x = x.reshape(B, H, W)
    return jnp.real(x).astype(jnp.float32), jnp.imag(x).astype(jnp.float32)


def _pack(yr, yi, B, H, W):
    return (yr + 1j * yi).astype(jnp.complex64).reshape(B, 1, H, W)


# ---- jitted wrappers / loops (one dispatch per smoothing sweep) --------------------
@functools.lru_cache(maxsize=None)
def _get_matvec_complex(B, H, W, inv_h2, msign):
    mv = _matvec_fn(B, H, W, inv_h2, msign)

    @jax.jit
    def apply(x, mr, mi):
        xr, xi = _split(x, B, H, W)
        yr, yi = mv(xr, xi, mr, mi)
        return _pack(yr, yi, B, H, W)
    return apply


@functools.lru_cache(maxsize=None)
def _get_residual(B, H, W, inv_h2):
    mv = _matvec_fn(B, H, W, inv_h2, 1.0)

    @jax.jit
    def run(b, x, mr, mi):
        xr, xi = _split(x, B, H, W)
        br, bi = _split(b, B, H, W)
        yr, yi = mv(xr, xi, mr, mi)
        return _pack(br - yr, bi - yi, B, H, W)
    return run


@functools.lru_cache(maxsize=None)
def _get_power_loop(B, H, W, inv_h2, iters):
    step = _power_step_fn(B, H, W, inv_h2)

    @jax.jit
    def run(br, bi, mr, mi):
        one = jnp.ones((1,), jnp.float32)

        def body(_, c):
            cr, ci, inv_s = c
            nr, ni, nsq = step(inv_s, cr, ci, mr, mi)
            nrm = jnp.sqrt(jnp.sum(nsq))
            return nr, ni, (1.0 / nrm).reshape(1).astype(jnp.float32)

        cr, ci, inv_s = lax.fori_loop(0, iters, body, (br, bi, one))
        nr, ni, _ = step(inv_s, cr, ci, mr, mi)     # normal op of the final normalized b
        s = inv_s[0]
        br_, bi_ = cr * s, ci * s
        # unconjugated inner products, matching torch.inner on complex vectors
        num_r = jnp.sum(nr * br_ - ni * bi_)
        num_i = jnp.sum(nr * bi_ + ni * br_)
        den_r = jnp.sum(br_ * br_ - bi_ * bi_)
        den_i = 2.0 * jnp.sum(br_ * bi_)
        return (num_r * den_r + num_i * den_i) / (den_r * den_r + den_i * den_i)
    return run


@functools.lru_cache(maxsize=None)
def _get_cheby_loop(B, H, W, inv_h2, max_iter):
    sweep = _cheby_sweep_fn(B, H, W, inv_h2, max_iter)

    @jax.jit
    def run(x, b, mr, mi, taus_seq):
        xr, xi = _split(x, B, H, W)
        br, bi = _split(b, B, H, W)
        xr, xi = sweep(taus_seq, xr, xi, br, bi, mr, mi)
        return _pack(xr, xi, B, H, W)
    return run


@functools.lru_cache(maxsize=None)
def _get_jacobi_loop(B, H, W, inv_h2, w, max_iter):
    sweep = _jacobi_sweep_fn(B, H, W, inv_h2, w, max_iter)

    @jax.jit
    def run(x, b, mr, mi):
        xr, xi = _split(x, B, H, W)
        br, bi = _split(b, B, H, W)
        xr, xi = sweep(xr, xi, br, bi, mr, mi)
        return _pack(xr, xi, B, H, W)
    return run


@functools.lru_cache(maxsize=None)
def _get_adr_apply(B, H, W, h, omega, gb):
    inv_h2 = 1.0 / (h * h)
    w_over_h = omega / h
    om2 = omega * omega
    use_pallas = _use_pallas(H, W)
    if use_pallas:
        p = _plane_spec(H, W)
        # gamma often has batch 1: index-map (0,0,0) avoids materializing a broadcast copy.
        pg = pl.BlockSpec((1, H, W), (lambda b: (0, 0, 0)) if gb == 1 else (lambda b: (b, 0, 0)))
        call = pl.pallas_call(
            functools.partial(_adr_kernel, inv_h2=inv_h2, w_over_h=w_over_h,
                              om2=om2, omega=omega),
            grid=(B,), in_specs=[p] * 6 + [pg], out_specs=(p, p), out_shape=_out2(B, H, W),
            compiler_params=_cparams())

    def _apply_planes(xr, xi, Tx, Ty, LT, kappa, gamma):
        tx = Tx.reshape(B, H, W).astype(jnp.float32)
        ty = Ty.reshape(B, H, W).astype(jnp.float32)
        lt = LT.reshape(B, H, W).astype(jnp.float32)
        kp = kappa.reshape(B, H, W).astype(jnp.float32)
        gm = gamma.reshape(gb, H, W).astype(jnp.float32)
        if use_pallas:
            return call(xr, xi, tx, ty, lt, kp, gm)
        return _adr_math(xr, xi, tx, ty, lt, kp, gm, _xla_shifts,
                         inv_h2, w_over_h, om2, omega)

    @jax.jit
    def apply_nchw(x, Tx, Ty, LT, kappa, gamma):
        xr, xi = _split(x, B, H, W)
        yr, yi = _apply_planes(xr, xi, Tx, Ty, LT, kappa, gamma)
        return _pack(yr, yi, B, H, W)

    @jax.jit
    def apply_cols(xcols, Tx, Ty, LT, kappa, gamma):
        # (H*W, B) complex column layout (fgmres): transposes + split/pack fused in one jit.
        x = jnp.transpose(xcols.reshape(H, W, 1, B), (3, 2, 0, 1))
        xr, xi = _split(x, B, H, W)
        yr, yi = _apply_planes(xr, xi, Tx, Ty, LT, kappa, gamma)
        y = _pack(yr, yi, B, H, W)
        return jnp.transpose(y, (2, 3, 1, 0)).reshape(-1, B)

    return apply_nchw, apply_cols


# ----------------------------------------------------------------------------------
# Helmholtz operator (JAX orchestration around the Pallas kernels)
# ----------------------------------------------------------------------------------
class HelmholtzJ:
    def __init__(self, kappa, gamma, omega):
        self.degree = 16
        self.kappa = kappa
        self.gamma = gamma
        self.omega = float(omega)
        B, _, H, W = kappa.shape
        self.h = 1.0 / H
        self._B, self._H, self._W = B, H, W
        self._inv_h2 = float(1.0 / (self.h * self.h))
        k32 = kappa.astype(jnp.float32).reshape(B, H, W)
        g32 = jnp.broadcast_to(gamma.astype(jnp.float32), kappa.shape).reshape(B, H, W)
        k2w = (k32 * k32) * self.omega
        self.M_re = k2w * self.omega          # split (B,H,W) f32 planes, computed once
        self.M_im = -(k2w * g32)

    # --- Pallas/XLA-backed primitives (complex in/out at the boundary only) ---------
    def matvec(self, x, SL=False):
        mi = (self.M_im - 0.5 * self.M_re) if SL else self.M_im
        return _get_matvec_complex(self._B, self._H, self._W, self._inv_h2, 1.0)(
            x, self.M_re, mi)

    def matvec_conj(self, x):
        return _get_matvec_complex(self._B, self._H, self._W, self._inv_h2, -1.0)(
            x, self.M_re, self.M_im)

    def helm_normal(self, x):
        return self.matvec_conj(self.matvec(x))

    def __call__(self, x, SL=False):
        return self.matvec(x, SL)

    def residual(self, b, x):
        """b - A x with the subtraction fused into the split/pack jit (one HBM pass)."""
        return _get_residual(self._B, self._H, self._W, self._inv_h2)(
            b, x, self.M_re, self.M_im)

    def adr_forward(self, x, Tx, Ty, LT):
        batch, m, n = Tx.shape[0], Tx.shape[-2], Tx.shape[-1]
        apply_nchw, apply_cols = _get_adr_apply(batch, m, n, float(self.h), self.omega,
                                                int(self.gamma.shape[0]))
        if x.ndim == 2:
            return apply_cols(x, Tx, Ty, LT, self.kappa, self.gamma)
        return apply_nchw(x, Tx, Ty, LT, self.kappa, self.gamma)

    # --- solver components (iteration loops fused inside single kernels) -----------
    def power_method(self, key=None):
        if key is None:
            key = jax.random.PRNGKey(7)
        k1, k2 = jax.random.split(key)
        shp = (self._B, self._H, self._W)
        br = jax.random.normal(k1, shp, jnp.float32)
        bi = jax.random.normal(k2, shp, jnp.float32)
        lam = _get_power_loop(self._B, self._H, self._W, self._inv_h2, 50)(
            br, bi, self.M_re, self.M_im)
        return float(lam)

    def chebysemi(self, x, b, max_iter, lam_max, alpha):
        lam_max = float(lam_max)
        lam_min = lam_max / alpha                         # (B,1)
        roots = [np.cos(np.pi * (2 * i + 1) / (2 * self.degree)) for i in range(self.degree)]
        perm = leb_shuffle_2n(self.degree)
        taus = [2.0 / (lam_max + lam_min - (lam_min - lam_max) * float(r)) for r in roots]
        taus_seq = jnp.stack([jnp.reshape(taus[int(perm[i])], (-1,))
                              for i in range(max_iter)], axis=0).astype(jnp.float32)
        run = _get_cheby_loop(self._B, self._H, self._W, self._inv_h2, int(max_iter))
        return run(x, b, self.M_re, self.M_im, taus_seq)

    def jacobi(self, x, b, max_iter, w, SL=False):
        if SL:
            # TODO(synk): SL branch is unused by WaveADR.forward; keep the simple form.
            R = (self.omega ** 2) * (self.kappa.astype(jnp.complex64) ** 2) * (1 - 0.5j)
            Dinv = 1.0 / (4.0 / (self.h ** 2) - R)
            for _ in range(max_iter):
                r = b - self.matvec(x, SL)
                x = x + w * Dinv * r
            return x
        run = _get_jacobi_loop(self._B, self._H, self._W, self._inv_h2, float(w), int(max_iter))
        return run(x, b, self.M_re, self.M_im)

    def adr_correction(self, r, T, Tx, Ty, LT, max_level):
        r_adr = r * jnp.exp(1j * self.omega * T)
        ah = v_cycle_adr(r_adr, self.kappa, self.gamma, self.omega, Tx, Ty, LT, 1, max_level)
        return ah * jnp.exp(-1j * self.omega * T)


# ----------------------------------------------------------------------------------
# FGMRES + ADR V-cycle + wave V-cycle (orchestration)
# ----------------------------------------------------------------------------------
def _lstsq_small_complex(U, rhs):
    """Least-squares solve of small per-batch complex Hessenberg systems (on-device)."""
    Uh = jnp.conj(jnp.swapaxes(U, -1, -2))
    G = Uh @ U                                    # (b, n, n)
    c = jnp.einsum('bij,bj->bi', Uh, rhs)         # (b, n)
    Gr, Gi = jnp.real(G), jnp.imag(G)
    top = jnp.concatenate([Gr, -Gi], axis=-1)
    bot = jnp.concatenate([Gi, Gr], axis=-1)
    Gbig = jnp.concatenate([top, bot], axis=-2)
    cbig = jnp.concatenate([jnp.real(c), jnp.imag(c)], axis=-1)
    ybig = jnp.linalg.solve(Gbig, cbig[..., None])[..., 0]
    n = U.shape[-1]
    return (ybig[..., :n] + 1j * ybig[..., n:]).astype(U.dtype)


def fgmres(A, Tx, Ty, LT, Brhs, restrt=20, max_iter=10, tol=1e-06, M=None, x0=None):
    batch, m, n = Tx.shape[0], Tx.shape[-2], Tx.shape[-1]
    N = m * n
    if x0 is None:
        x0 = jnp.zeros_like(Brhs)
    Bv = jnp.transpose(Brhs, (2, 3, 1, 0)).reshape(N, batch)
    x0 = jnp.transpose(x0, (2, 3, 1, 0)).reshape(N, batch)

    def mv(v):
        return A(v, Tx, Ty, LT)

    if M is None:
        M = lambda v: v

    r0 = Bv - mv(x0)
    beta = jnp.linalg.norm(r0, axis=0)
    res1 = jnp.mean(beta)
    ress = [res1]
    for _ in range(max_iter):
        rhs = jnp.zeros((restrt + 1, batch), dtype=Bv.dtype).at[0].set(beta.astype(Bv.dtype))
        Q, Z = [None] * restrt, [None] * restrt
        Hm = jnp.zeros((restrt + 1, restrt, batch), dtype=Bv.dtype)
        ww = None
        for k in range(restrt):
            qk = (r0 / beta) if k == 0 else ww
            Q[k] = qk
            Z[k] = M(qk)
            ww = mv(Z[k])
            for j in range(k + 1):
                hjk = jnp.sum(ww * jnp.conj(Q[j]), axis=0)
                Hm = Hm.at[j, k].set(hjk)
                ww = ww - hjk * Q[j]
            beta = jnp.linalg.norm(ww, axis=0)
            ww = ww / beta
            Hm = Hm.at[k + 1, k].set(beta.astype(Bv.dtype))
        U = jnp.transpose(Hm, (2, 0, 1))                   # (batch, restrt+1, restrt)
        rhs_ = jnp.transpose(rhs, (1, 0))                  # (batch, restrt+1)
        y = _lstsq_small_complex(U, rhs_)                  # (batch, restrt)
        Zmat = jnp.stack(Z, axis=1)                        # (N, restrt, batch)
        x0 = x0 + jnp.einsum('bnk,bk->nb', jnp.transpose(Zmat, (2, 0, 1)), y)
        r0 = Bv - mv(x0)
        beta = jnp.linalg.norm(r0, axis=0)
        res = jnp.mean(beta) / res1
        ress.append(res)
        # NOTE: the reference's `if res < tol: break` forced a device->host sync every
        # outer iteration; the model only ever calls fgmres with max_iter=1, so skipping
        # the early exit keeps the whole V-cycle asynchronous without changing results.
    return jnp.transpose(x0.reshape(m, n, 1, batch), (3, 2, 0, 1)), ress


def v_cycle_adr(b, kappa, gamma, omega, Tx, Ty, LT, level, max_level, x=None):
    if x is None:
        x = jnp.zeros_like(b)
    Helm = HelmholtzJ(kappa, gamma, omega)
    if level == max_level:
        x = fgmres(Helm.adr_forward, Tx, Ty, LT, b, restrt=10, max_iter=1, x0=x)[0]
        return x
    x = fgmres(Helm.adr_forward, Tx, Ty, LT, b, restrt=3, max_iter=1, x0=x)[0]
    r = b - Helm.adr_forward(x, Tx, Ty, LT)
    rc = down(r)
    kappa = down(kappa)
    gamma = down(gamma)
    Tx = down(Tx)
    Ty = down(Ty)
    LT = down(LT)
    ec = v_cycle_adr(rc, kappa, gamma, omega, Tx, Ty, LT, level + 1, max_level)
    e = up(ec)
    x = x + e
    Tx = up(Tx)
    Ty = up(Ty)
    LT = up(LT)
    x = fgmres(Helm.adr_forward, Tx, Ty, LT, b, restrt=3, max_iter=1, x0=x)[0]
    return x


def vcycle_wave_adr(b, kappa, gamma, omega, level, max_level, T, Tx, Ty, LT,
                    lams, alphas, plot=False, x=None):
    if x is None:
        x = jnp.zeros_like(b)
    Helm = HelmholtzJ(kappa, gamma, omega)
    w = 2.0 / 3.0
    if level == 1:
        x = Helm.jacobi(x, b, 3, w)
    elif level == max_level:
        x = Helm.chebysemi(x, b, 10, lams[level - 1], alphas[level - 3])
        return x
    elif level == 3:
        x = x
    else:
        x = Helm.chebysemi(x, b, 5, lams[level - 1], alphas[level - 2])
    r = Helm.residual(b, x)
    rc = down(r)
    kappa_c = down(kappa)
    gamma_c = down(gamma)
    ec = vcycle_wave_adr(rc, kappa_c, gamma_c, omega, level + 1, max_level,
                         T, Tx, Ty, LT, lams, alphas, plot)
    e = up(ec)
    x = x + e
    if level == 1:
        x = Helm.jacobi(x, b, 3, w)
    elif level == 2:
        x = Helm.chebysemi(x, b, 5, lams[level - 1], alphas[level - 2])
        r = Helm.residual(b, x)
        e = Helm.adr_correction(r, T[:, 0:1], Tx[:, 0:1], Ty[:, 0:1], LT[:, 0:1],
                                max_level - level)
        x = x + e
        for i2 in range(1, T.shape[1]):
            r = Helm.residual(b, x)
            e = Helm.adr_correction(r, T[:, i2:i2 + 1], Tx[:, i2:i2 + 1],
                                    Ty[:, i2:i2 + 1], LT[:, i2:i2 + 1], max_level - level)
            x = x + e
    elif level == 3:
        x = x
    else:
        x = Helm.chebysemi(x, b, 5, lams[level - 1], alphas[level - 2])
    return x


# ----------------------------------------------------------------------------------
# WaveADR model
# ----------------------------------------------------------------------------------
class WaveADRJ:
    def __init__(self, config):
        self.act = config['act']
        self.M = config['M']
        self.xavier_init = config['xavier_init']
        # TODO(synk): UNet / sFNO_epsilon_v2 / CNN class definitions are not provided with
        # the reference module; deterministic 1x1-conv stand-ins with matching interfaces.
        key = jax.random.PRNGKey(0)
        k1, k2 = jax.random.split(key)
        gain = self.xavier_init if self.xavier_init > 0 else 1.0
        bound = gain * np.sqrt(6.0 / (3 + 4))
        self.no_w = jax.random.uniform(k1, (4, 3), jnp.float32, -bound, bound)
        self.no_b = jnp.full((4,), 0.01, jnp.float32)
        self.ma_w = jax.random.uniform(k2, (1, 1), jnp.float32, -gain, gain)
        self.ma_b = jnp.full((1,), 0.01, jnp.float32)

    def neural_operator(self, inp):     # (B,3,H,W) -> (B,4,H,W)
        z = jnp.einsum('oc,bchw->bohw', self.no_w, inp) + self.no_b[None, :, None, None]
        return 1.0 + 0.1 * jnp.tanh(z)

    def meta_alpha(self, kappa, omega, N):   # -> (B,1) spectrum ratio for Chebyshev smoothing
        m = jnp.mean(kappa, axis=(1, 2, 3)).reshape(-1, 1)
        return 3.0 + jnp.tanh(self.ma_w[0, 0] * m + self.ma_b[0])

    def constant_T(self, m, n, src):
        h = 1.0 / (m - 1)
        x1 = np.arange(m) * h - src[0] * h
        x2 = np.arange(n) * h - src[1] * h
        X1, X2 = np.meshgrid(x1, x2, indexing='ij')
        T = np.sqrt(X1 ** 2 + X2 ** 2)
        L = np.where(T > 0, 1.0 / np.where(T > 0, T, 1.0), 0.0)
        asinh1 = float(np.arcsinh(1.0))
        L[src[0], src[1]] = 2 * (h * asinh1 + h * asinh1) / h ** 2
        G1 = X1 * L
        G1[src[0], src[1]] = 1 / np.sqrt(2.0)
        G2 = X2 * L
        G2[src[0], src[1]] = 1 / np.sqrt(2.0)
        if m == n:
            Tx, Ty = G1.T[None, None], G2.T[None, None]
        else:
            Tx, Ty = G1[None, None], G2[None, None]
        to = lambda a: jnp.asarray(a, dtype=jnp.float32)
        return to(T[None, None]), to(Tx), to(Ty), to(L[None, None])

    def setup(self, kappa, omega, src, max_level):
        gridx, gridy = get_grid2D(kappa.shape)
        no_input = jnp.concatenate([kappa, gridx.astype(kappa.dtype),
                                    gridy.astype(kappa.dtype)], axis=1)
        y = self.neural_operator(no_input)
        T1, Tx1, Ty1, LT1 = y[:, 0:1], y[:, 1:2], y[:, 2:3], y[:, 3:4]
        m, n = kappa.shape[-2], kappa.shape[-1]
        i, j = src[0] // 2, src[1] // 2
        T0, Tx0, Ty0, LT0 = self.constant_T(m, n, [i, j])
        Tx0 = Tx0.at[:, :, i, j].set(0.0)
        Ty0 = Ty0.at[:, :, i, j].set(0.0)
        T = T0 * T1
        Tx = Tx0 * T1 + T0 * Tx1
        Ty = Ty0 * T1 + T0 * Ty1
        LT = LT0 * T1 + 2 * (Tx0 * Tx1 + Ty0 * Ty1) + T0 * LT1
        alphas = []
        kk = kappa
        for _ in range(max_level - 2):
            N_ = kk.shape[-1]
            alphas.append(self.meta_alpha(kk.astype(jnp.float32), omega, N_))
            kk = down(kk)
        return T, Tx, Ty, LT, alphas

    def setup_cheby(self, kappa, gamma, omega, max_level):
        lam_max = []
        key = jax.random.PRNGKey(42)
        for _ in range(max_level):
            Helm = HelmholtzJ(kappa, gamma, omega)
            key, sub = jax.random.split(key)
            lam_max.append(Helm.power_method(sub))
            kappa = down(kappa)
            gamma = down(gamma)
        return lam_max

    def forward(self, f, kappa, u):
        N = kappa.shape[-2]
        if N == 128:
            omega, max_level = 20 * np.pi, 6
        elif N == 256:
            omega, max_level = 40 * np.pi, 7
        else:
            omega, max_level = 80 * np.pi, 8
        gamma_val = 0.0
        gamma = absorbing_layer(gamma_val, kappa[0, 0], [16, 16], omega)
        Helm = HelmholtzJ(kappa, gamma, omega)
        T, Tx, Ty, LT, alphas = self.setup(down(kappa), omega, [N // 2, N // 2], max_level)
        lams = self.setup_cheby(kappa, gamma, omega, max_level)
        x = jnp.zeros_like(u)
        for _ in range(3):
            x = vcycle_wave_adr(f, kappa, gamma, omega, 1, max_level, T, Tx, Ty, LT,
                                lams, alphas, False, x)
        r = Helm.residual(f, x)
        res = jnp.linalg.norm(r.ravel()) / jnp.linalg.norm(f.ravel())
        return res


# ----------------------------------------------------------------------------------
# smoke test: compile + run every Pallas kernel at a lane-dense shape and check it
# against the shared XLA math (the same code the coarse-level fallback uses)
# ----------------------------------------------------------------------------------
def _smoke_test_pallas_ops():
    B, H, W = 2, 128, 128
    inv_h2 = float(H * H)
    key = jax.random.PRNGKey(3)
    ks = jax.random.split(key, 12)

    def rnd(k):
        return jax.random.normal(k, (B, H, W), jnp.float32)

    xr, xi, br, bi, mr, mi = (rnd(k) for k in ks[:6])

    def check(got, want, name, tol=2e-3):
        for g, wv in zip(got, want):
            g = np.asarray(jax.block_until_ready(g))
            wv = np.asarray(wv)
            err = np.max(np.abs(g - wv)) / (np.max(np.abs(wv)) + 1e-30)
            assert err < tol, f"{name}: pallas/xla mismatch rel_err={err}"

    # Helmholtz matvec
    check(jax.jit(_matvec_fn(B, H, W, inv_h2, 1.0))(xr, xi, mr, mi),
          _Ax(xr, xi, mr, mi, _xla_shifts, inv_h2, 1.0), "helm_matvec")

    # fused Chebyshev sweep (3 iterations, realistically small taus)
    max_iter = 3
    lam = 16.0 * inv_h2 * inv_h2
    taus = jax.random.uniform(ks[6], (max_iter, B), jnp.float32) / lam
    got = jax.jit(_cheby_sweep_fn(B, H, W, inv_h2, max_iter))(taus, xr, xi, br, bi, mr, mi)
    bcr, bci = _Ax(br, bi, mr, mi, _xla_shifts, inv_h2, -1.0)
    cr, ci = xr, xi
    for i in range(max_iter):
        tr, ti = _Ax(cr, ci, mr, mi, _xla_shifts, inv_h2, 1.0)
        nr, ni = _Ax(tr, ti, mr, mi, _xla_shifts, inv_h2, -1.0)
        t = taus[i][:, None, None]
        cr, ci = cr + t * (bcr - nr), ci + t * (bci - ni)
    check(got, (cr, ci), "cheby_sweep")

    # fused damped-Jacobi sweep (3 iterations)
    w = 2.0 / 3.0
    got = jax.jit(_jacobi_sweep_fn(B, H, W, inv_h2, w, 3))(xr, xi, br, bi, mr, mi)
    wdinv = w / (4.0 * inv_h2 - mr)
    cr, ci = xr, xi
    for _ in range(3):
        tr, ti = _Ax(cr, ci, mr, mi, _xla_shifts, inv_h2, 1.0)
        cr, ci = cr + wdinv * (br - tr), ci + wdinv * (bi - ti)
    check(got, (cr, ci), "jacobi_sweep")

    # power-method step (scaled normal op + per-batch ||.||^2)
    inv_s = jnp.array([0.5], jnp.float32)
    got = jax.jit(_power_step_fn(B, H, W, inv_h2))(inv_s, xr, xi, mr, mi)
    tr, ti = _Ax(0.5 * xr, 0.5 * xi, mr, mi, _xla_shifts, inv_h2, 1.0)
    nr, ni = _Ax(tr, ti, mr, mi, _xla_shifts, inv_h2, -1.0)
    nsq = (jnp.sum(nr * nr, axis=(1, 2), keepdims=True)
           + jnp.sum(ni * ni, axis=(1, 2), keepdims=True))
    check(got, (nr, ni, nsq), "power_step")

    # ADR matvec
    h = 1.0 / H
    omega = float(20.0 * np.pi)
    tx, ty, lt = rnd(ks[7]), rnd(ks[8]), rnd(ks[9])
    kp = 0.5 + 0.1 * jnp.abs(tx)
    gm = 0.1 * jnp.abs(ty[:1])
    x_c = (xr + 1j * xi).astype(jnp.complex64).reshape(B, 1, H, W)
    apply_nchw, _ = _get_adr_apply(B, H, W, h, omega, 1)
    got = apply_nchw(x_c, tx.reshape(B, 1, H, W), ty.reshape(B, 1, H, W),
                     lt.reshape(B, 1, H, W), kp.reshape(B, 1, H, W), gm.reshape(1, 1, H, W))
    want_r, want_i = _adr_math(xr, xi, tx, ty, lt, kp, gm, _xla_shifts,
                               1.0 / (h * h), omega / h, omega * omega, omega)
    check((jnp.real(got).reshape(B, H, W), jnp.imag(got).reshape(B, H, W)),
          (want_r, want_i), "adr_matvec")


# ----------------------------------------------------------------------------------
if __name__ == "__main__":
    _smoke_test_pallas_ops()

    key = jax.random.PRNGKey(0)
    k_kappa, k_fr, k_fi = jax.random.split(key, 3)
    B, N = 2, 128   # N=128 matches the module's branch logic (omega = 20*pi, max_level = 6)
    kappa = 0.5 + 0.5 * jax.random.uniform(k_kappa, (B, 1, N, N), dtype=jnp.float32)
    f = (jax.random.normal(k_fr, (B, 1, N, N), jnp.float32)
         + 1j * jax.random.normal(k_fi, (B, 1, N, N), jnp.float32)).astype(jnp.complex64)
    u = jnp.zeros((B, 1, N, N), jnp.complex64)

    config = {'act': 'gelu', 'M': 2, 'NO_Type': 'UNet', 'xavier_init': 1.0}
    model = WaveADRJ(config)
    res = model.forward(f, kappa, u)
    jax.block_until_ready(res)
    print("KERNEL_OK")
</pallas_src>

<mosaic_0001>
module attributes {stable_mosaic.version = 11 : i64} {
  func.func @_helm_matvec_kernel(%arg0: i32, %arg1: memref<1x128x128xf32, #tpu.memory_space<vmem>>, %arg2: memref<1x128x128xf32, #tpu.memory_space<vmem>>, %arg3: memref<1x128x128xf32, #tpu.memory_space<vmem>>, %arg4: memref<1x128x128xf32, #tpu.memory_space<vmem>>, %arg5: memref<1x128x128xf32, #tpu.memory_space<vmem>>, %arg6: memref<1x128x128xf32, #tpu.memory_space<vmem>>) attributes {dimension_semantics = [#tpu.dimension_semantics<parallel>], iteration_bounds = array<i64: 2>, scalar_prefetch = 0 : i64, scratch_operands = 0 : i64, tpu.core_type = #tpu.core_type<tc>, window_params = [{transform_indices = @transform_0, window_bounds = array<i64: 1, 128, 128>}, {transform_indices = @transform_1, window_bounds = array<i64: 1, 128, 128>}, {transform_indices = @transform_2, window_bounds = array<i64: 1, 128, 128>}, {transform_indices = @transform_3, window_bounds = array<i64: 1, 128, 128>}, {transform_indices = @transform_4, window_bounds = array<i64: 1, 128, 128>}, {transform_indices = @transform_5, window_bounds = array<i64: 1, 128, 128>}]} {
    %0 = tpu.iota {dimensions = array<i32: 0>} : vector<128x128xi32>
    %1 = tpu.iota {dimensions = array<i32: 1>} : vector<128x128xi32>
    %c0_i32 = arith.constant 0 : i32
    %2 = vector.broadcast %c0_i32 : i32 to vector<128x128xi32>
    %3 = arith.cmpi sgt, %0, %2 : vector<128x128xi32>
    %4 = arith.extui %3 : vector<128x128xi1> to vector<128x128xi32>
    %5 = arith.sitofp %4 : vector<128x128xi32> to vector<128x128xf32>
    %c127_i32 = arith.constant 127 : i32
    %6 = vector.broadcast %c127_i32 : i32 to vector<128x128xi32>
    %7 = arith.cmpi slt, %0, %6 : vector<128x128xi32>
    %8 = arith.extui %7 : vector<128x128xi1> to vector<128x128xi32>
    %9 = arith.sitofp %8 : vector<128x128xi32> to vector<128x128xf32>
    %c0_i32_0 = arith.constant 0 : i32
    %10 = vector.broadcast %c0_i32_0 : i32 to vector<128x128xi32>
    %11 = arith.cmpi sgt, %1, %10 : vector<128x128xi32>
    %12 = arith.extui %11 : vector<128x128xi1> to vector<128x128xi32>
    %13 = arith.sitofp %12 : vector<128x128xi32> to vector<128x128xf32>
    %c127_i32_1 = arith.constant 127 : i32
    %14 = vector.broadcast %c127_i32_1 : i32 to vector<128x128xi32>
    %15 = arith.cmpi slt, %1, %14 : vector<128x128xi32>
    %16 = arith.extui %15 : vector<128x128xi1> to vector<128x128xi32>
    %17 = arith.sitofp %16 : vector<128x128xi32> to vector<128x128xf32>
    %c0 = arith.constant 0 : index
    %c0_2 = arith.constant 0 : index
    %c0_3 = arith.constant 0 : index
    %18 = vector.load %arg1[%c0, %c0_2, %c0_3] : memref<1x128x128xf32, #tpu.memory_space<vmem>>, vector<1x128x128xf32>
    %19 = vector.shape_cast %18 : vector<1x128x128xf32> to vector<128x128xf32>
    %c0_4 = arith.constant 0 : index
    %c0_5 = arith.constant 0 : index
    %c0_6 = arith.constant 0 : index
    %20 = vector.load %arg2[%c0_4, %c0_5, %c0_6] : memref<1x128x128xf32, #tpu.memory_space<vmem>>, vector<1x128x128xf32>
    %21 = vector.shape_cast %20 : vector<1x128x128xf32> to vector<128x128xf32>
    %c0_7 = arith.constant 0 : index
    %c0_8 = arith.constant 0 : index
    %c0_9 = arith.constant 0 : index
    %22 = vector.load %arg3[%c0_7, %c0_8, %c0_9] : memref<1x128x128xf32, #tpu.memory_space<vmem>>, vector<1x128x128xf32>
    %23 = vector.shape_cast %22 : vector<1x128x128xf32> to vector<128x128xf32>
    %c0_10 = arith.constant 0 : index
    %c0_11 = arith.constant 0 : index
    %c0_12 = arith.constant 0 : index
    %24 = vector.load %arg4[%c0_10, %c0_11, %c0_12] : memref<1x128x128xf32, #tpu.memory_space<vmem>>, vector<1x128x128xf32>
    %25 = vector.shape_cast %24 : vector<1x128x128xf32> to vector<128x128xf32>
    %26 = vector.extract_strided_slice %19 {offsets = [127, 0], sizes = [1, 128], strides = [1, 1]} : vector<128x128xf32> to vector<1x128xf32>
    %27 = vector.extract_strided_slice %19 {offsets = [0, 0], sizes = [127, 128], strides = [1, 1]} : vector<128x128xf32> to vector<127x128xf32>
    %28 = tpu.concatenate %26, %27 in 0 : vector<1x128xf32>, vector<127x128xf32> -> vector<128x128xf32>
    %29 = arith.mulf %5, %28 : vector<128x128xf32>
    %30 = vector.extract_strided_slice %19 {offsets = [1, 0], sizes = [127, 128], strides = [1, 1]} : vector<128x128xf32> to vector<127x128xf32>
    %31 = vector.extract_strided_slice %19 {offsets = [0, 0], sizes = [1, 128], strides = [1, 1]} : vector<128x128xf32> to vector<1x128xf32>
    %32 = tpu.concatenate %30, %31 in 0 : vector<127x128xf32>, vector<1x128xf32> -> vector<128x128xf32>
    %33 = arith.mulf %9, %32 : vector<128x128xf32>
    %34 = vector.extract_strided_slice %19 {offsets = [0, 127], sizes = [128, 1], strides = [1, 1]} : vector<128x128xf32> to vector<128x1xf32>
    %35 = vector.extract_strided_slice %19 {offsets = [0, 0], sizes = [128, 127], strides = [1, 1]} : vector<128x128xf32> to vector<128x127xf32>
    %36 = tpu.concatenate %34, %35 in 1 : vector<128x1xf32>, vector<128x127xf32> -> vector<128x128xf32>
    %37 = arith.mulf %13, %36 : vector<128x128xf32>
    %38 = vector.extract_strided_slice %19 {offsets = [0, 1], sizes = [128, 127], strides = [1, 1]} : vector<128x128xf32> to vector<128x127xf32>
    %39 = vector.extract_strided_slice %19 {offsets = [0, 0], sizes = [128, 1], strides = [1, 1]} : vector<128x128xf32> to vector<128x1xf32>
    %40 = tpu.concatenate %38, %39 in 1 : vector<128x127xf32>, vector<128x1xf32> -> vector<128x128xf32>
    %41 = arith.mulf %17, %40 : vector<128x128xf32>
    %cst = arith.constant 4.000000e+00 : f32
    %42 = vector.broadcast %cst : f32 to vector<128x128xf32>
    %43 = arith.mulf %42, %19 : vector<128x128xf32>
    %44 = arith.subf %43, %29 : vector<128x128xf32>
    %45 = arith.subf %44, %33 : vector<128x128xf32>
    %46 = arith.subf %45, %37 : vector<128x128xf32>
    %47 = arith.subf %46, %41 : vector<128x128xf32>
    %cst_13 = arith.constant 1.638400e+04 : f32
    %48 = vector.broadcast %cst_13 : f32 to vector<128x128xf32>
    %49 = arith.mulf %48, %47 : vector<128x128xf32>
    %50 = arith.mulf %23, %19 : vector<128x128xf32>
    %51 = arith.mulf %25, %21 : vector<128x128xf32>
    %cst_14 = arith.constant 1.000000e+00 : f32
    %52 = vector.broadcast %cst_14 : f32 to vector<128x128xf32>
    %53 = arith.mulf %52, %51 : vector<128x128xf32>
    %54 = arith.subf %50, %53 : vector<128x128xf32>
    %55 = arith.subf %49, %54 : vector<128x128xf32>
    %56 = vector.extract_strided_slice %21 {offsets = [127, 0], sizes = [1, 128], strides = [1, 1]} : vector<128x128xf32> to vector<1x128xf32>
    %57 = vector.extract_strided_slice %21 {offsets = [0, 0], sizes = [127, 128], strides = [1, 1]} : vector<128x128xf32> to vector<127x128xf32>
    %58 = tpu.concatenate %56, %57 in 0 : vector<1x128xf32>, vector<127x128xf32> -> vector<128x128xf32>
    %59 = arith.mulf %5, %58 : vector<128x128xf32>
    %60 = vector.extract_strided_slice %21 {offsets = [1, 0], sizes = [127, 128], strides = [1, 1]} : vector<128x128xf32> to vector<127x128xf32>
    %61 = vector.extract_strided_slice %21 {offsets = [0, 0], sizes = [1, 128], strides = [1, 1]} : vector<128x128xf32> to vector<1x128xf32>
    %62 = tpu.concatenate %60, %61 in 0 : vector<127x128xf32>, vector<1x128xf32> -> vector<128x128xf32>
    %63 = arith.mulf %9, %62 : vector<128x128xf32>
    %64 = vector.extract_strided_slice %21 {offsets = [0, 127], sizes = [128, 1], strides = [1, 1]} : vector<128x128xf32> to vector<128x1xf32>
    %65 = vector.extract_strided_slice %21 {offsets = [0, 0], sizes = [128, 127], strides = [1, 1]} : vector<128x128xf32> to vector<128x127xf32>
    %66 = tpu.concatenate %64, %65 in 1 : vector<128x1xf32>, vector<128x127xf32> -> vector<128x128xf32>
    %67 = arith.mulf %13, %66 : vector<128x128xf32>
    %68 = vector.extract_strided_slice %21 {offsets = [0, 1], sizes = [128, 127], strides = [1, 1]} : vector<128x128xf32> to vector<128x127xf32>
    %69 = vector.extract_strided_slice %21 {offsets = [0, 0], sizes = [128, 1], strides = [1, 1]} : vector<128x128xf32> to vector<128x1xf32>
    %70 = tpu.concatenate %68, %69 in 1 : vector<128x127xf32>, vector<128x1xf32> -> vector<128x128xf32>
    %71 = arith.mulf %17, %70 : vector<128x128xf32>
    %cst_15 = arith.constant 4.000000e+00 : f32
    %72 = vector.broadcast %cst_15 : f32 to vector<128x128xf32>
    %73 = arith.mulf %72, %21 : vector<128x128xf32>
    %74 = arith.subf %73, %59 : vector<128x128xf32>
    %75 = arith.subf %74, %63 : vector<128x128xf32>
    %76 = arith.subf %75, %67 : vector<128x128xf32>
    %77 = arith.subf %76, %71 : vector<128x128xf32>
    %cst_16 = arith.constant 1.638400e+04 : f32
    %78 = vector.broadcast %cst_16 : f32 to vector<128x128xf32>
    %79 = arith.mulf %78, %77 : vector<128x128xf32>
    %80 = arith.mulf %23, %21 : vector<128x128xf32>
    %81 = arith.mulf %25, %19 : vector<128x128xf32>
    %cst_17 = arith.constant 1.000000e+00 : f32
    %82 = vector.broadcast %cst_17 : f32 to vector<128x128xf32>
    %83 = arith.mulf %82, %81 : vector<128x128xf32>
    %84 = arith.addf %80, %83 : vector<128x128xf32>
    %85 = arith.subf %79, %84 : vector<128x128xf32>
    %c0_18 = arith.constant 0 : index
    %c0_19 = arith.constant 0 : index
    %c0_20 = arith.constant 0 : index
    %86 = vector.load %arg5[%c0_18, %c0_19, %c0_20] : memref<1x128x128xf32, #tpu.memory_space<vmem>>, vector<1x128x128xf32>
    %87 = vector.shape_cast %86 : vector<1x128x128xf32> to vector<128x128xf32>
    %88 = vector.shape_cast %55 : vector<128x128xf32> to vector<1x128x128xf32>
    tpu.vector_store %arg5[%c0_18, %c0_19, %c0_20], %88 {strides = array<i32>} : memref<1x128x128xf32, #tpu.memory_space<vmem>>, vector<1x128x128xf32>,
    %c0_21 = arith.constant 0 : index
    %c0_22 = arith.constant 0 : index
    %c0_23 = arith.constant 0 : index
    %89 = vector.load %arg6[%c0_21, %c0_22, %c0_23] : memref<1x128x128xf32, #tpu.memory_space<vmem>>, vector<1x128x128xf32>
    %90 = vector.shape_cast %89 : vector<1x128x128xf32> to vector<128x128xf32>
    %91 = vector.shape_cast %85 : vector<128x128xf32> to vector<1x128x128xf32>
    tpu.vector_store %arg6[%c0_21, %c0_22, %c0_23], %91 {strides = array<i32>} : memref<1x128x128xf32, #tpu.memory_space<vmem>>, vector<1x128x128xf32>,
    return
  }
  func.func @transform_0(%arg0: i32) -> (i32, i32, i32) {
    %c0_i32 = arith.constant 0 : i32
    %c0_i32_0 = arith.constant 0 : i32
    %c0_i32_1 = arith.constant 0 : i32
    return %arg0, %c0_i32, %c0_i32_0 : i32, i32, i32
  }
  func.func @transform_1(%arg0: i32) -> (i32, i32, i32) {
    %c0_i32 = arith.constant 0 : i32
    %c0_i32_0 = arith.constant 0 : i32
    %c0_i32_1 = arith.constant 0 : i32
    return %arg0, %c0_i32, %c0_i32_0 : i32, i32, i32
  }
  func.func @transform_2(%arg0: i32) -> (i32, i32, i32) {
    %c0_i32 = arith.constant 0 : i32
    %c0_i32_0 = arith.constant 0 : i32
    %c0_i32_1 = arith.constant 0 : i32
    return %arg0, %c0_i32, %c0_i32_0 : i32, i32, i32
  }
  func.func @transform_3(%arg0: i32) -> (i32, i32, i32) {
    %c0_i32 = arith.constant 0 : i32
    %c0_i32_0 = arith.constant 0 : i32
    %c0_i32_1 = arith.constant 0 : i32
    return %arg0, %c0_i32, %c0_i32_0 : i32, i32, i32
  }
  func.func @transform_4(%arg0: i32) -> (i32, i32, i32) {
    %c0_i32 = arith.constant 0 : i32
    %c0_i32_0 = arith.constant 0 : i32
    %c0_i32_1 = arith.constant 0 : i32
    return %arg0, %c0_i32, %c0_i32_0 : i32, i32, i32
  }
  func.func @transform_5(%arg0: i32) -> (i32, i32, i32) {
    %c0_i32 = arith.constant 0 : i32
    %c0_i32_0 = arith.constant 0 : i32
    %c0_i32_1 = arith.constant 0 : i32
    return %arg0, %c0_i32, %c0_i32_0 : i32, i32, i32
  }
}

</mosaic_0001>

<llo_original>
// kernel: tpu_custom_call.1
$region0: #{tpu_custom_call.1}
  #allocation0 [shape = 'u32[]', space=smem, size = 0x4, offset = 0x4, fixed_abs, tag = 'smem constant byte address 0x4 - core index']
  #allocation1 [shape = 'u32[144,128]{1,0:T(1,128)}', space=vmem, size = 0x12000, scoped, tag = 'internal scratch']
  %s0 = inlined_call_operand.hbm [shape: f32[2,128,128], index: 0, kind: input, shape index: {}]
  %s1 = inlined_call_operand.hbm [shape: f32[2,128,128], index: 1, kind: input, shape index: {}]
  %s2 = inlined_call_operand.hbm [shape: f32[2,128,128], index: 2, kind: input, shape index: {}]
  %s3 = inlined_call_operand.hbm [shape: f32[2,128,128], index: 3, kind: input, shape index: {}]
  %s4 = inlined_call_operand.hbm [shape: f32[2,128,128], index: 4, kind: output, shape index: {0}]
  %s5 = inlined_call_operand.hbm [shape: f32[2,128,128], index: 5, kind: output, shape index: {1}]
  %6 = xla_tuple %s4, %s5
  %s7 = sld [smem:[#allocation0]]
  $region73: #{tpu_custom_call.1} parent=0
    _
  %s9 = ssub.s32 1, %s7
  %s10 = scalar_select 0, %s9, %s7
  $region1: #{tpu_custom_call.1} parent=0
    #allocation2 [shape = 'u8[131072]{0}', space=vmem, size = 0x20000, scoped, tag = 'input window, operand 0']
    #allocation3 [shape = 's32[2]{0}', space=sflag, size = 0x8, scoped, tag = 'scoped memory for tpu_custom_call.1']
    #allocation4 [shape = 's32[2]{0}', space=sflag, size = 0x8, scoped, tag = 'scoped memory for tpu_custom_call.1']
    #allocation5 [shape = 'u8[131072]{0}', space=vmem, size = 0x20000, scoped, tag = 'input window, operand 1']
    #allocation6 [shape = 's32[2]{0}', space=sflag, size = 0x8, scoped, tag = 'scoped memory for tpu_custom_call.1']
    #allocation7 [shape = 'u8[131072]{0}', space=vmem, size = 0x20000, scoped, tag = 'input window, operand 2']
    #allocation8 [shape = 'u8[131072]{0}', space=vmem, size = 0x20000, scoped, tag = 'input window, operand 3']
    #allocation9 [shape = 's32[2]{0}', space=sflag, size = 0x8, scoped, tag = 'scoped memory for tpu_custom_call.1']
    #allocation10 [shape = 'u8[131072]{0}', space=vmem, size = 0x20000, scoped, tag = 'output window, operand 0']
    #allocation11 [shape = 'u8[131072]{0}', space=vmem, size = 0x20000, scoped, tag = 'output window, operand 1']
    #allocation12 [shape = 's32[2]{0}', space=sflag, size = 0x8, scoped, tag = 'scoped memory for tpu_custom_call.1']
    %11 = vsyncpa [#allocation3], 0
    %s12 = scalar_lea.sflag [#allocation3], 1
    %13 = vsyncpa %s12, 0
    %14 = vsyncpa [#allocation6], 0
    %s15 = scalar_lea.sflag [#allocation6], 1
    %16 = vsyncpa %s15, 0
    %17 = vsyncpa [#allocation9], 0
    %s18 = scalar_lea.sflag [#allocation9], 1
    %19 = vsyncpa %s18, 0
    %20 = vsyncpa [#allocation4], 0
    %s21 = scalar_lea.sflag [#allocation4], 1
    %22 = vsyncpa %s21, 0
    %23 = vsyncpa [#allocation12], 0
    %s24 = scalar_lea.sflag [#allocation12], 1
    %25 = vsyncpa %s24, 0
    loop: start=0, step=1, limit=4
    $region2: #{tpu_custom_call.1} parent=1 // loop_pre_header
      _
    $region3: #{tpu_custom_call.1} parent=1 // loop_header
      %s27 = sphi 0, %s31
      %p28 = scmp.ge.s32.totalorder %s27, 4
      %s37 = sphi 0, %s39
      %s40 = sphi 0, %s37
      %s41 = sphi 0, %s40
      %s57 = sphi 0, %s41
      %s63 = sphi 0, %s65
      %s66 = sphi 0, %s63
      %s67 = sphi 0, %s66
      %s83 = sphi 0, %s67
      %s89 = sphi 0, %s91
      %s92 = sphi 0, %s89
      %s93 = sphi 0, %s92
      %s109 = sphi 0, %s93
      %s115 = sphi 0, %s117
      %s118 = sphi 0, %s115
      %s119 = sphi 0, %s118
      %s135 = sphi 0, %s119
      %s141 = sphi 0, %s143
      %s144 = sphi 0, %s141
      %s145 = sphi 0, %s144
      %s161 = sphi 0, %s145
      %s167 = sphi 0, %s169
      %s170 = sphi 0, %s167
      %s171 = sphi 0, %s170
      %s187 = sphi 0, %s171
    $region4: #{tpu_custom_call.1} parent=1 // loop_header_branch
      %30 = sbr.rel (%p28) target = $region8
    $region5: #{tpu_custom_call.1} parent=1 // loop_body
      %s32 = ssub.s32 %s27, 1
      %s33 = ssub.s32 %s27, 2
      %s34 = sadd.s32 %s27, 1
      %s35 = ssub.s32 %s27, %s34
      %p36 = scmp.eq.s32.totalorder %s35, 0
      %s38 = sadd.s32 %s37, 1
      %s39 = scalar_select %p36, %s37, %s38
      %p42 = pneg %p36
      %p43 = scmp.eq.s32.totalorder %s27, 1
      %p44 = por %p42, %p43
      %p45 = scmp.ne.s32.totalorder %s37, %s40
      %p46 = scmp.eq.s32.totalorder %s27, 0
      %p47 = por %p45, %p46
      %p48 = scmp.ne.s32.totalorder %s37, %s40
      %p49 = scmp.eq.s32.totalorder %s32, 1
      %p50 = por %p48, %p49
      %p51 = scmp.ne.s32.totalorder %s40, %s41
      %p52 = scmp.eq.s32.totalorder %s32, 0
      %p53 = por %p51, %p52
      %p54 = scmp.ne.s32.totalorder %s40, %s41
      %p55 = scmp.eq.s32.totalorder %s33, 1
      %p56 = por %p54, %p55
      %p58 = scmp.ne.s32.totalorder %s41, %s57
      %p59 = scmp.eq.s32.totalorder %s33, 0
      %p60 = por %p58, %p59
      %s61 = ssub.s32 %s27, %s34
      %p62 = scmp.eq.s32.totalorder %s61, 0
      %s64 = sadd.s32 %s63, 1
      %s65 = scalar_select %p62, %s63, %s64
      %p68 = pneg %p62
      %p69 = scmp.eq.s32.totalorder %s27, 1
      %p70 = por %p68, %p69
      %p71 = scmp.ne.s32.totalorder %s63, %s66
      %p72 = scmp.eq.s32.totalorder %s27, 0
      %p73 = por %p71, %p72
      %p74 = scmp.ne.s32.totalorder %s63, %s66
      %p75 = scmp.eq.s32.totalorder %s32, 1
      %p76 = por %p74, %p75
      %p77 = scmp.ne.s32.totalorder %s66, %s67
      %p78 = scmp.eq.s32.totalorder %s32, 0
      %p79 = por %p77, %p78
      %p80 = scmp.ne.s32.totalorder %s66, %s67
      %p81 = scmp.eq.s32.totalorder %s33, 1
      %p82 = por %p80, %p81
      %p84 = scmp.ne.s32.totalorder %s67, %s83
      %p85 = scmp.eq.s32.totalorder %s33, 0
      %p86 = por %p84, %p85
      %s87 = ssub.s32 %s27, %s34
      %p88 = scmp.eq.s32.totalorder %s87, 0
      %s90 = sadd.s32 %s89, 1
      %s91 = scalar_select %p88, %s89, %s90
      %p94 = pneg %p88
      %p95 = scmp.eq.s32.totalorder %s27, 1
      %p96 = por %p94, %p95
      %p97 = scmp.ne.s32.totalorder %s89, %s92
      %p98 = scmp.eq.s32.totalorder %s27, 0
      %p99 = por %p97, %p98
      %p100 = scmp.ne.s32.totalorder %s89, %s92
      %p101 = scmp.eq.s32.totalorder %s32, 1
      %p102 = por %p100, %p101
      %p103 = scmp.ne.s32.totalorder %s92, %s93
      %p104 = scmp.eq.s32.totalorder %s32, 0
      %p105 = por %p103, %p104
      %p106 = scmp.ne.s32.totalorder %s92, %s93
      %p107 = scmp.eq.s32.totalorder %s33, 1
      %p108 = por %p106, %p107
      %p110 = scmp.ne.s32.totalorder %s93, %s109
      %p111 = scmp.eq.s32.totalorder %s33, 0
      %p112 = por %p110, %p111
      %s113 = ssub.s32 %s27, %s34
      %p114 = scmp.eq.s32.totalorder %s113, 0
      %s116 = sadd.s32 %s115, 1
      %s117 = scalar_select %p114, %s115, %s116
      %p120 = pneg %p114
      %p121 = scmp.eq.s32.totalorder %s27, 1
      %p122 = por %p120, %p121
      %p123 = scmp.ne.s32.totalorder %s115, %s118
      %p124 = scmp.eq.s32.totalorder %s27, 0
      %p125 = por %p123, %p124
      %p126 = scmp.ne.s32.totalorder %s115, %s118
      %p127 = scmp.eq.s32.totalorder %s32, 1
      %p128 = por %p126, %p127
      %p129 = scmp.ne.s32.totalorder %s118, %s119
      %p130 = scmp.eq.s32.totalorder %s32, 0
      %p131 = por %p129, %p130
      %p132 = scmp.ne.s32.totalorder %s118, %s119
      %p133 = scmp.eq.s32.totalorder %s33, 1
      %p134 = por %p132, %p133
      %p136 = scmp.ne.s32.totalorder %s119, %s135
      %p137 = scmp.eq.s32.totalorder %s33, 0
      %p138 = por %p136, %p137
      %s139 = ssub.s32 %s27, %s34
      %p140 = scmp.eq.s32.totalorder %s139, 0
      %s142 = sadd.s32 %s141, 1
      %s143 = scalar_select %p140, %s141, %s142
      %p146 = pneg %p140
      %p147 = scmp.eq.s32.totalorder %s27, 1
      %p148 = por %p146, %p147
      %p149 = scmp.ne.s32.totalorder %s141, %s144
      %p150 = scmp.eq.s32.totalorder %s27, 0
      %p151 = por %p149, %p150
      %p152 = scmp.ne.s32.totalorder %s141, %s144
      %p153 = scmp.eq.s32.totalorder %s32, 1
      %p154 = por %p152, %p153
      %p155 = scmp.ne.s32.totalorder %s144, %s145
      %p156 = scmp.eq.s32.totalorder %s32, 0
      %p157 = por %p155, %p156
      %p158 = scmp.ne.s32.totalorder %s144, %s145
      %p159 = scmp.eq.s32.totalorder %s33, 1
      %p160 = por %p158, %p159
      %p162 = scmp.ne.s32.totalorder %s145, %s161
      %p163 = scmp.eq.s32.totalorder %s33, 0
      %p164 = por %p162, %p163
      %s165 = ssub.s32 %s27, %s34
      %p166 = scmp.eq.s32.totalorder %s165, 0
      %s168 = sadd.s32 %s167, 1
      %s169 = scalar_select %p166, %s167, %s168
      %p172 = pneg %p166
      %p173 = scmp.eq.s32.totalorder %s27, 1
      %p174 = por %p172, %p173
      %p175 = scmp.ne.s32.totalorder %s167, %s170
      %p176 = scmp.eq.s32.totalorder %s27, 0
      %p177 = por %p175, %p176
      %p178 = scmp.ne.s32.totalorder %s167, %s170
      %p179 = scmp.eq.s32.totalorder %s32, 1
      %p180 = por %p178, %p179
      %p181 = scmp.ne.s32.totalorder %s170, %s171
      %p182 = scmp.eq.s32.totalorder %s32, 0
      %p183 = por %p181, %p182
      %p184 = scmp.ne.s32.totalorder %s170, %s171
      %p185 = scmp.eq.s32.totalorder %s33, 1
      %p186 = por %p184, %p185
      %p188 = scmp.ne.s32.totalorder %s171, %s187
      %p189 = scmp.eq.s32.totalorder %s33, 0
      %p190 = por %p188, %p189
      %p191 = scmp.le.s32.totalorder 1, %s27
      %p192 = scmp.lt.s32.totalorder %s27, 3
      %p193 = pnand %p191, %p192
      %p194 = pneg %p193
      // Predicated region
      $region9: #{tpu_custom_call.1} parent=5 // pred_check
        _
      $region10: #{tpu_custom_call.1} parent=5 // pred_check_branch
        %196 = sbr.rel (%p193) target = $region12
      $region11: #{tpu_custom_call.1} parent=5 // pred_region
        %s197 = ssub.s32 %s27, 1
      $region12: #{tpu_custom_call.1} parent=5 // pred_fallthru
        _
      %p198 = scmp.lt.s32.totalorder %s27, 2
      // Predicated region
      $region13: #{tpu_custom_call.1} parent=5 // pred_check
        %p199 = pneg %p198
      $region14: #{tpu_custom_call.1} parent=5 // pred_check_branch
        %201 = sbr.rel (%p199) target = $region16
      $region15: #{tpu_custom_call.1} parent=5 // pred_region
        // Predicated region
        $region17: #{tpu_custom_call.1} parent=15 // pred_check
          %p202 = pneg %p47
        $region18: #{tpu_custom_call.1} parent=15 // pred_check_branch
          %204 = sbr.rel (%p202) target = $region20
        $region19: #{tpu_custom_call.1} parent=15 // pred_region
          %s205 = sand.u32 %s37, 1
          %s206 = scalar_lea.sflag [#allocation3], %s205
          %s207 = sand.u32 %s37, 1
          %s208 = smul.addr %s207, 128
          %s209 = scalar_lea.vmem [#allocation2], %s208
          %s211 = ssub.s32 2048, 2048
          %212 = vsyncadd %s206, %s211
          %s213 = smul.addr %s27, 16
          %s214 = smul.addr %s213, 128
          %s215 = scalar_lea.hbm %s0, %s214
          %s216 = sshll.u32 %s209, 4
          %s217 = int_to_ptr.vmem [resolvable:$true] %s216
          %222 = dma.hbm_to_vmem [thread:$0]  %s215, 2048, %s217, %s206, 128, 128, 8
        $region20: #{tpu_custom_call.1} parent=15 // pred_fallthru
          _
        // Predicated region
        $region21: #{tpu_custom_call.1} parent=15 // pred_check
          %p223 = pneg %p73
        $region22: #{tpu_custom_call.1} parent=15 // pred_check_branch
          %225 = sbr.rel (%p223) target = $region24
        $region23: #{tpu_custom_call.1} parent=15 // pred_region
          %s226 = sand.u32 %s27, 1
          %s227 = scalar_lea.sflag [#allocation6], %s226
          %s228 = sand.u32 %s63, 1
          %s229 = smul.addr %s228, 128
          %s230 = scalar_lea.vmem [#allocation5], %s229
          %s232 = ssub.s32 2048, 2048
          %233 = vsyncadd %s227, %s232
          %s234 = smul.addr %s27, 16
          %s235 = smul.addr %s234, 128
          %s236 = scalar_lea.hbm %s1, %s235
          %s237 = sshll.u32 %s230, 4
          %s238 = int_to_ptr.vmem [resolvable:$true] %s237
          %243 = dma.hbm_to_vmem [thread:$0]  %s236, 2048, %s238, %s227, 128, 128, 8
        $region24: #{tpu_custom_call.1} parent=15 // pred_fallthru
          _
        // Predicated region
        $region25: #{tpu_custom_call.1} parent=15 // pred_check
          %p244 = pneg %p99
        $region26: #{tpu_custom_call.1} parent=15 // pred_check_branch
          %246 = sbr.rel (%p244) target = $region28
        $region27: #{tpu_custom_call.1} parent=15 // pred_region
          %s247 = sand.u32 %s27, 1
          %s248 = scalar_lea.sflag [#allocation6], %s247
          %s249 = sand.u32 %s89, 1
          %s250 = smul.addr %s249, 128
          %s251 = scalar_lea.vmem [#allocation7], %s250
          %s253 = ssub.s32 2048, 2048
          %254 = vsyncadd %s248, %s253
          %s255 = smul.addr %s27, 16
          %s256 = smul.addr %s255, 128
          %s257 = scalar_lea.hbm %s2, %s256
          %s258 = sshll.u32 %s251, 4
          %s259 = int_to_ptr.vmem [resolvable:$true] %s258
          %264 = dma.hbm_to_vmem [thread:$0]  %s257, 2048, %s259, %s248, 128, 128, 8
        $region28: #{tpu_custom_call.1} parent=15 // pred_fallthru
          _
        // Predicated region
        $region29: #{tpu_custom_call.1} parent=15 // pred_check
          %p265 = pneg %p125
        $region30: #{tpu_custom_call.1} parent=15 // pred_check_branch
          %267 = sbr.rel (%p265) target = $region32
        $region31: #{tpu_custom_call.1} parent=15 // pred_region
          %s268 = sand.u32 %s115, 1
          %s269 = scalar_lea.sflag [#allocation9], %s268
          %s270 = sand.u32 %s115, 1
          %s271 = smul.addr %s270, 128
          %s272 = scalar_lea.vmem [#allocation8], %s271
          %s274 = ssub.s32 2048, 2048
          %275 = vsyncadd %s269, %s274
          %s276 = smul.addr %s27, 16
          %s277 = smul.addr %s276, 128
          %s278 = scalar_lea.hbm %s3, %s277
          %s279 = sshll.u32 %s272, 4
          %s280 = int_to_ptr.vmem [resolvable:$true] %s279
          %285 = dma.hbm_to_vmem [thread:$0]  %s278, 2048, %s280, %s269, 128, 128, 8
        $region32: #{tpu_custom_call.1} parent=15 // pred_fallthru
          _
      $region16: #{tpu_custom_call.1} parent=5 // pred_fallthru
        _
      %p286 = scmp.le.s32.totalorder 1, %s27
      %p287 = scmp.lt.s32.totalorder %s27, 3
      %p288 = pnand %p286, %p287
      %p289 = pneg %p288
      // Predicated region
      $region33: #{tpu_custom_call.1} parent=5 // pred_check
        _
      $region34: #{tpu_custom_call.1} parent=5 // pred_check_branch
        %291 = sbr.rel (%p288) target = $region36
      $region35: #{tpu_custom_call.1} parent=5 // pred_region
        %s292 = ssub.s32 %s27, 1
        %s293 = sand.u32 %s40, 1
        %s294 = scalar_lea.sflag [#allocation3], %s293
        %s295 = sand.u32 %s40, 1
        %s296 = smul.addr %s295, 128
        %s297 = scalar_lea.vmem [#allocation2], %s296
        // Predicated region
        $region37: #{tpu_custom_call.1} parent=35 // pred_check
          %p298 = pneg %p53
        $region38: #{tpu_custom_call.1} parent=35 // pred_check_branch
          %300 = sbr.rel (%p298) target = $region40
        $region39: #{tpu_custom_call.1} parent=35 // pred_region
          %301 = dma.done %s294, 2048
        $region40: #{tpu_custom_call.1} parent=35 // pred_fallthru
          _
        %s302 = sand.u32 %s32, 1
        %s303 = scalar_lea.sflag [#allocation6], %s302
        %s304 = sand.u32 %s66, 1
        %s305 = smul.addr %s304, 128
        %s306 = scalar_lea.vmem [#allocation5], %s305
        // Predicated region
        $region41: #{tpu_custom_call.1} parent=35 // pred_check
          %p307 = pneg %p79
        $region42: #{tpu_custom_call.1} parent=35 // pred_check_branch
          %309 = sbr.rel (%p307) target = $region44
        $region43: #{tpu_custom_call.1} parent=35 // pred_region
          %310 = dma.done %s303, 2048
        $region44: #{tpu_custom_call.1} parent=35 // pred_fallthru
          _
        %s311 = sand.u32 %s32, 1
        %s312 = scalar_lea.sflag [#allocation6], %s311
        %s313 = sand.u32 %s92, 1
        %s314 = smul.addr %s313, 128
        %s315 = scalar_lea.vmem [#allocation7], %s314
        // Predicated region
        $region45: #{tpu_custom_call.1} parent=35 // pred_check
          %p316 = pneg %p105
        $region46: #{tpu_custom_call.1} parent=35 // pred_check_branch
          %318 = sbr.rel (%p316) target = $region48
        $region47: #{tpu_custom_call.1} parent=35 // pred_region
          %319 = dma.done %s312, 2048
        $region48: #{tpu_custom_call.1} parent=35 // pred_fallthru
          _
        %s320 = sand.u32 %s118, 1
        %s321 = scalar_lea.sflag [#allocation9], %s320
        %s322 = sand.u32 %s118, 1
        %s323 = smul.addr %s322, 128
        %s324 = scalar_lea.vmem [#allocation8], %s323
        // Predicated region
        $region49: #{tpu_custom_call.1} parent=35 // pred_check
          %p325 = pneg %p131
        $region50: #{tpu_custom_call.1} parent=35 // pred_check_branch
          %327 = sbr.rel (%p325) target = $region52
        $region51: #{tpu_custom_call.1} parent=35 // pred_region
          %328 = dma.done %s321, 2048
        $region52: #{tpu_custom_call.1} parent=35 // pred_fallthru
          _
        %s329 = sand.u32 %s40, 1
        %s330 = scalar_lea.sflag [#allocation3], %s329
        %s331 = sand.u32 %s40, 1
        %s332 = smul.addr %s331, 128
        %s333 = scalar_lea.vmem [#allocation2], %s332
        %p334 = pneg %p53
        %p335 = pneg %p50
        %s336 = sand.u32 %s32, 1
        %s337 = scalar_lea.sflag [#allocation6], %s336
        %s338 = sand.u32 %s66, 1
        %s339 = smul.addr %s338, 128
        %s340 = scalar_lea.vmem [#allocation5], %s339
        %p341 = pneg %p79
        %p342 = pneg %p76
        %s343 = sand.u32 %s32, 1
        %s344 = scalar_lea.sflag [#allocation6], %s343
        %s345 = sand.u32 %s92, 1
        %s346 = smul.addr %s345, 128
        %s347 = scalar_lea.vmem [#allocation7], %s346
        %p348 = pneg %p105
        %p349 = pneg %p102
        %s350 = sand.u32 %s118, 1
        %s351 = scalar_lea.sflag [#allocation9], %s350
        %s352 = sand.u32 %s118, 1
        %s353 = smul.addr %s352, 128
        %s354 = scalar_lea.vmem [#allocation8], %s353
        %p355 = pneg %p131
        %p356 = pneg %p128
        %p357 = pneg %p157
        %p358 = pneg %p154
        %s359 = sand.u32 %s144, 1
        %s360 = scalar_lea.sflag [#allocation4], %s359
        %s361 = sand.u32 %s144, 1
        %s362 = smul.addr %s361, 128
        %s363 = scalar_lea.vmem [#allocation10], %s362
        %p364 = pneg %p183
        %p365 = pneg %p180
        %s366 = sand.u32 %s170, 1
        %s367 = scalar_lea.sflag [#allocation12], %s366
        %s368 = sand.u32 %s170, 1
        %s369 = smul.addr %s368, 128
        %s370 = scalar_lea.vmem [#allocation11], %s369
        %v371 = vlaneseq
        %v372 = vshrl.u32 %v371, 7
        %v373 = vadd.s32 %v372, 8
        %v374 = vadd.s32 %v372, 16
        %v375 = vadd.s32 %v372, 24
        %v376 = vadd.s32 %v372, 32
        %v377 = vadd.s32 %v372, 40
        %v378 = vadd.s32 %v372, 48
        %v379 = vadd.s32 %v372, 56
        %v380 = vadd.s32 %v372, 64
        %v381 = vadd.s32 %v372, 72
        %v382 = vadd.s32 %v372, 80
        %v383 = vadd.s32 %v372, 88
        %v384 = vadd.s32 %v372, 96
        %v385 = vadd.s32 %v372, 104
        %v386 = vadd.s32 %v372, 112
        %v387 = vadd.s32 %v372, 120
        %v388 = vlaneseq
        %v389 = vand.u32 %v388, 127
        %vm390 = vcmp.gt.s32.totalorder %v372, 0
        %vm391 = vcmp.gt.s32.totalorder %v373, 0
        %vm392 = vcmp.gt.s32.totalorder %v374, 0
        %vm393 = vcmp.gt.s32.totalorder %v375, 0
        %vm394 = vcmp.gt.s32.totalorder %v376, 0
        %vm395 = vcmp.gt.s32.totalorder %v377, 0
        %vm396 = vcmp.gt.s32.totalorder %v378, 0
        %vm397 = vcmp.gt.s32.totalorder %v379, 0
        %vm398 = vcmp.gt.s32.totalorder %v380, 0
        %vm399 = vcmp.gt.s32.totalorder %v381, 0
        %vm400 = vcmp.gt.s32.totalorder %v382, 0
        %vm401 = vcmp.gt.s32.totalorder %v383, 0
        %vm402 = vcmp.gt.s32.totalorder %v384, 0
        %vm403 = vcmp.gt.s32.totalorder %v385, 0
        %vm404 = vcmp.gt.s32.totalorder %v386, 0
        %vm405 = vcmp.gt.s32.totalorder %v387, 0
        %v406 = vsel %vm390, 1, 0
        %v407 = vsel %vm391, 1, 0
        %v408 = vsel %vm392, 1, 0
        %v409 = vsel %vm393, 1, 0
        %v410 = vsel %vm394, 1, 0
        %v411 = vsel %vm395, 1, 0
        %v412 = vsel %vm396, 1, 0
        %v413 = vsel %vm397, 1, 0
        %v414 = vsel %vm398, 1, 0
        %v415 = vsel %vm399, 1, 0
        %v416 = vsel %vm400, 1, 0
        %v417 = vsel %vm401, 1, 0
        %v418 = vsel %vm402, 1, 0
        %v419 = vsel %vm403, 1, 0
        %v420 = vsel %vm404, 1, 0
        %v421 = vsel %vm405, 1, 0
        %v422 = vcvt.s32.f32 %v406
        %v423 = vcvt.s32.f32 %v407
        %v424 = vcvt.s32.f32 %v408
        %v425 = vcvt.s32.f32 %v409
        %v426 = vcvt.s32.f32 %v410
        %v427 = vcvt.s32.f32 %v411
        %v428 = vcvt.s32.f32 %v412
        %v429 = vcvt.s32.f32 %v413
        %v430 = vcvt.s32.f32 %v414
        %v431 = vcvt.s32.f32 %v415
        %v432 = vcvt.s32.f32 %v416
        %v433 = vcvt.s32.f32 %v417
        %v434 = vcvt.s32.f32 %v418
        %v435 = vcvt.s32.f32 %v419
        %v436 = vcvt.s32.f32 %v420
        %v437 = vcvt.s32.f32 %v421
        %vm438 = vcmp.lt.s32.totalorder %v372, 127
        %vm439 = vcmp.lt.s32.totalorder %v373, 127
        %vm440 = vcmp.lt.s32.totalorder %v374, 127
        %vm441 = vcmp.lt.s32.totalorder %v375, 127
        %vm442 = vcmp.lt.s32.totalorder %v376, 127
        %vm443 = vcmp.lt.s32.totalorder %v377, 127
        %vm444 = vcmp.lt.s32.totalorder %v378, 127
        %vm445 = vcmp.lt.s32.totalorder %v379, 127
        %vm446 = vcmp.lt.s32.totalorder %v380, 127
        %vm447 = vcmp.lt.s32.totalorder %v381, 127
        %vm448 = vcmp.lt.s32.totalorder %v382, 127
        %vm449 = vcmp.lt.s32.totalorder %v383, 127
        %vm450 = vcmp.lt.s32.totalorder %v384, 127
        %vm451 = vcmp.lt.s32.totalorder %v385, 127
        %vm452 = vcmp.lt.s32.totalorder %v386, 127
        %vm453 = vcmp.lt.s32.totalorder %v387, 127
        %v454 = vsel %vm438, 1, 0
        %v455 = vsel %vm439, 1, 0
        %v456 = vsel %vm440, 1, 0
        %v457 = vsel %vm441, 1, 0
        %v458 = vsel %vm442, 1, 0
        %v459 = vsel %vm443, 1, 0
        %v460 = vsel %vm444, 1, 0
        %v461 = vsel %vm445, 1, 0
        %v462 = vsel %vm446, 1, 0
        %v463 = vsel %vm447, 1, 0
        %v464 = vsel %vm448, 1, 0
        %v465 = vsel %vm449, 1, 0
        %v466 = vsel %vm450, 1, 0
        %v467 = vsel %vm451, 1, 0
        %v468 = vsel %vm452, 1, 0
        %v469 = vsel %vm453, 1, 0
        %v470 = vcvt.s32.f32 %v454
        %v471 = vcvt.s32.f32 %v455
        %v472 = vcvt.s32.f32 %v456
        %v473 = vcvt.s32.f32 %v457
        %v474 = vcvt.s32.f32 %v458
        %v475 = vcvt.s32.f32 %v459
        %v476 = vcvt.s32.f32 %v460
        %v477 = vcvt.s32.f32 %v461
        %v478 = vcvt.s32.f32 %v462
        %v479 = vcvt.s32.f32 %v463
        %v480 = vcvt.s32.f32 %v464
        %v481 = vcvt.s32.f32 %v465
        %v482 = vcvt.s32.f32 %v466
        %v483 = vcvt.s32.f32 %v467
        %v484 = vcvt.s32.f32 %v468
        %v485 = vcvt.s32.f32 %v469
        %vm486 = vcmp.gt.s32.totalorder %v389, 0
        %v487 = vsel %vm486, 1, 0
        %v488 = vcvt.s32.f32 %v487
        %vm489 = vcmp.lt.s32.totalorder %v389, 127
        %v490 = vsel %vm489, 1, 0
        %v491 = vcvt.s32.f32 %v490
        %v492 = vld [vmem:[%s297] sm:$0xff]
        %v493 = vld [vmem:[%s297 + $0x8] sm:$0xff]
        %v494 = vld [vmem:[%s297 + $0x10] sm:$0xff]
        %v495 = vld [vmem:[%s297 + $0x18] sm:$0xff]
        %v496 = vld [vmem:[%s297 + $0x20] sm:$0xff]
        %v497 = vld [vmem:[%s297 + $0x28] sm:$0xff]
        %v498 = vld [vmem:[%s297 + $0x30] sm:$0xff]
        %v499 = vld [vmem:[%s297 + $0x38] sm:$0xff]
        %v500 = vld [vmem:[%s297 + $0x40] sm:$0xff]
        %v501 = vld [vmem:[%s297 + $0x48] sm:$0xff]
        %v502 = vld [vmem:[%s297 + $0x50] sm:$0xff]
        %v503 = vld [vmem:[%s297 + $0x58] sm:$0xff]
        %v504 = vld [vmem:[%s297 + $0x60] sm:$0xff]
        %v505 = vld [vmem:[%s297 + $0x68] sm:$0xff]
        %v506 = vld [vmem:[%s297 + $0x70] sm:$0xff]
        %v507 = vld [vmem:[%s297 + $0x78] sm:$0xff]
        %v508 = vld [vmem:[%s306] sm:$0xff]
        %v509 = vld [vmem:[%s306 + $0x8] sm:$0xff]
        %v510 = vld [vmem:[%s306 + $0x10] sm:$0xff]
        %v511 = vld [vmem:[%s306 + $0x18] sm:$0xff]
        %v512 = vld [vmem:[%s306 + $0x20] sm:$0xff]
        %v513 = vld [vmem:[%s306 + $0x28] sm:$0xff]
        %v514 = vld [vmem:[%s306 + $0x30] sm:$0xff]
        %v515 = vld [vmem:[%s306 + $0x38] sm:$0xff]
        %v516 = vld [vmem:[%s306 + $0x40] sm:$0xff]
        %v517 = vld [vmem:[%s306 + $0x48] sm:$0xff]
        %v518 = vld [vmem:[%s306 + $0x50] sm:$0xff]
        %v519 = vld [vmem:[%s306 + $0x58] sm:$0xff]
        %v520 = vld [vmem:[%s306 + $0x60] sm:$0xff]
        %v521 = vld [vmem:[%s306 + $0x68] sm:$0xff]
        %v522 = vld [vmem:[%s306 + $0x70] sm:$0xff]
        %v523 = vld [vmem:[%s306 + $0x78] sm:$0xff]
        %v524 = vld [vmem:[%s315] sm:$0xff]
        %v525 = vld [vmem:[%s315 + $0x8] sm:$0xff]
        %v526 = vld [vmem:[%s315 + $0x10] sm:$0xff]
        %v527 = vld [vmem:[%s315 + $0x18] sm:$0xff]
        %v528 = vld [vmem:[%s315 + $0x20] sm:$0xff]
        %v529 = vld [vmem:[%s315 + $0x28] sm:$0xff]
        %v530 = vld [vmem:[%s315 + $0x30] sm:$0xff]
        %v531 = vld [vmem:[%s315 + $0x38] sm:$0xff]
        %v532 = vld [vmem:[%s315 + $0x40] sm:$0xff]
        %v533 = vld [vmem:[%s315 + $0x48] sm:$0xff]
        %v534 = vld [vmem:[%s315 + $0x50] sm:$0xff]
        %v535 = vld [vmem:[%s315 + $0x58] sm:$0xff]
        %v536 = vld [vmem:[%s315 + $0x60] sm:$0xff]
        %v537 = vld [vmem:[%s315 + $0x68] sm:$0xff]
        %v538 = vld [vmem:[%s315 + $0x70] sm:$0xff]
        %v539 = vld [vmem:[%s315 + $0x78] sm:$0xff]
        %v540 = vld [vmem:[%s324] sm:$0xff]
        %v541 = vld [vmem:[%s324 + $0x8] sm:$0xff]
        %v542 = vld [vmem:[%s324 + $0x10] sm:$0xff]
        %v543 = vld [vmem:[%s324 + $0x18] sm:$0xff]
        %v544 = vld [vmem:[%s324 + $0x20] sm:$0xff]
        %v545 = vld [vmem:[%s324 + $0x28] sm:$0xff]
        %v546 = vld [vmem:[%s324 + $0x30] sm:$0xff]
        %v547 = vld [vmem:[%s324 + $0x38] sm:$0xff]
        %v548 = vld [vmem:[%s324 + $0x40] sm:$0xff]
        %v549 = vld [vmem:[%s324 + $0x48] sm:$0xff]
        %v550 = vld [vmem:[%s324 + $0x50] sm:$0xff]
        %v551 = vld [vmem:[%s324 + $0x58] sm:$0xff]
        %v552 = vld [vmem:[%s324 + $0x60] sm:$0xff]
        %v553 = vld [vmem:[%s324 + $0x68] sm:$0xff]
        %v554 = vld [vmem:[%s324 + $0x70] sm:$0xff]
        %v555 = vld [vmem:[%s324 + $0x78] sm:$0xff]
        %v557 = vrot.slane %v507, 7
        %vm574 = vcmask 1040384
        %v575 = vrot.slane %v492, 7
        %v576 = vrot.slane %v493, 7
        %v577 = vsel %vm574, %v575, %v576
        %v578 = vrot.slane %v494, 7
        %v579 = vsel %vm574, %v576, %v578
        %v580 = vrot.slane %v495, 7
        %v581 = vsel %vm574, %v578, %v580
        %v582 = vrot.slane %v496, 7
        %v583 = vsel %vm574, %v580, %v582
        %v584 = vrot.slane %v497, 7
        %v585 = vsel %vm574, %v582, %v584
        %v586 = vrot.slane %v498, 7
        %v587 = vsel %vm574, %v584, %v586
        %v588 = vrot.slane %v499, 7
        %v589 = vsel %vm574, %v586, %v588
        %v590 = vrot.slane %v500, 7
        %v591 = vsel %vm574, %v588, %v590
        %v592 = vrot.slane %v501, 7
        %v593 = vsel %vm574, %v590, %v592
        %v594 = vrot.slane %v502, 7
        %v595 = vsel %vm574, %v592, %v594
        %v596 = vrot.slane %v503, 7
        %v597 = vsel %vm574, %v594, %v596
        %v598 = vrot.slane %v504, 7
        %v599 = vsel %vm574, %v596, %v598
        %v600 = vrot.slane %v505, 7
        %v601 = vsel %vm574, %v598, %v600
        %v602 = vrot.slane %v506, 7
        %v603 = vsel %vm574, %v600, %v602
        %v604 = vsel %vm574, %v602, %v557
        %v621 = vsel %vm574, %v557, %v575
        %v622 = vmul.f32 %v422, %v621
        %v623 = vmul.f32 %v423, %v577
        %v624 = vmul.f32 %v424, %v579
        %v625 = vmul.f32 %v425, %v581
        %v626 = vmul.f32 %v426, %v583
        %v627 = vmul.f32 %v427, %v585
        %v628 = vmul.f32 %v428, %v587
        %v629 = vmul.f32 %v429, %v589
        %v630 = vmul.f32 %v430, %v591
        %v631 = vmul.f32 %v431, %v593
        %v632 = vmul.f32 %v432, %v595
        %v633 = vmul.f32 %v433, %v597
        %v634 = vmul.f32 %v434, %v599
        %v635 = vmul.f32 %v435, %v601
        %v636 = vmul.f32 %v436, %v603
        %v637 = vmul.f32 %v437, %v604
        %vm638 = vcmask 1046528
        %v639 = vrot.slane %v492, 1
        %v640 = vrot.slane %v493, 1
        %v641 = vsel %vm638, %v639, %v640
        %v642 = vrot.slane %v494, 1
        %v643 = vsel %vm638, %v640, %v642
        %v644 = vrot.slane %v495, 1
        %v645 = vsel %vm638, %v642, %v644
        %v646 = vrot.slane %v496, 1
        %v647 = vsel %vm638, %v644, %v646
        %v648 = vrot.slane %v497, 1
        %v649 = vsel %vm638, %v646, %v648
        %v650 = vrot.slane %v498, 1
        %v651 = vsel %vm638, %v648, %v650
        %v652 = vrot.slane %v499, 1
        %v653 = vsel %vm638, %v650, %v652
        %v654 = vrot.slane %v500, 1
        %v655 = vsel %vm638, %v652, %v654
        %v656 = vrot.slane %v501, 1
        %v657 = vsel %vm638, %v654, %v656
        %v658 = vrot.slane %v502, 1
        %v659 = vsel %vm638, %v656, %v658
        %v660 = vrot.slane %v503, 1
        %v661 = vsel %vm638, %v658, %v660
        %v662 = vrot.slane %v504, 1
        %v663 = vsel %vm638, %v660, %v662
        %v664 = vrot.slane %v505, 1
        %v665 = vsel %vm638, %v662, %v664
        %v666 = vrot.slane %v506, 1
        %v667 = vsel %vm638, %v664, %v666
        %v668 = vrot.slane %v507, 1
        %v669 = vsel %vm638, %v666, %v668
        %v687 = vsel %vm638, %v668, %v639
        %v688 = vmul.f32 %v470, %v641
        %v689 = vmul.f32 %v471, %v643
        %v690 = vmul.f32 %v472, %v645
        %v691 = vmul.f32 %v473, %v647
        %v692 = vmul.f32 %v474, %v649
        %v693 = vmul.f32 %v475, %v651
        %v694 = vmul.f32 %v476, %v653
        %v695 = vmul.f32 %v477, %v655
        %v696 = vmul.f32 %v478, %v657
        %v697 = vmul.f32 %v479, %v659
        %v698 = vmul.f32 %v480, %v661
        %v699 = vmul.f32 %v481, %v663
        %v700 = vmul.f32 %v482, %v665
        %v701 = vmul.f32 %v483, %v667
        %v702 = vmul.f32 %v484, %v669
        %v703 = vmul.f32 %v485, %v687
        %704 = vrot.lane.b32.xlu0 %v492, 1
        %v705 = vpop.permute.xlu0 %704
        %706 = vrot.lane.b32.xlu0 %v493, 1
        %v707 = vpop.permute.xlu0 %706
        %708 = vrot.lane.b32.xlu0 %v494, 1
        %v709 = vpop.permute.xlu0 %708
        %710 = vrot.lane.b32.xlu0 %v495, 1
        %v711 = vpop.permute.xlu0 %710
        %712 = vrot.lane.b32.xlu0 %v496, 1
        %v713 = vpop.permute.xlu0 %712
        %714 = vrot.lane.b32.xlu0 %v497, 1
        %v715 = vpop.permute.xlu0 %714
        %716 = vrot.lane.b32.xlu0 %v498, 1
        %v717 = vpop.permute.xlu0 %716
        %718 = vrot.lane.b32.xlu0 %v499, 1
        %v719 = vpop.permute.xlu0 %718
        %720 = vrot.lane.b32.xlu0 %v500, 1
        %v721 = vpop.permute.xlu0 %720
        %722 = vrot.lane.b32.xlu0 %v501, 1
        %v723 = vpop.permute.xlu0 %722
        %724 = vrot.lane.b32.xlu0 %v502, 1
        %v725 = vpop.permute.xlu0 %724
        %726 = vrot.lane.b32.xlu0 %v503, 1
        %v727 = vpop.permute.xlu0 %726
        %728 = vrot.lane.b32.xlu0 %v504, 1
        %v729 = vpop.permute.xlu0 %728
        %730 = vrot.lane.b32.xlu0 %v505, 1
        %v731 = vpop.permute.xlu0 %730
        %732 = vrot.lane.b32.xlu0 %v506, 1
        %v733 = vpop.permute.xlu0 %732
        %734 = vrot.lane.b32.xlu0 %v507, 1
        %v735 = vpop.permute.xlu0 %734
        %v752 = vmul.f32 %v488, %v705
        %v753 = vmul.f32 %v488, %v707
        %v754 = vmul.f32 %v488, %v709
        %v755 = vmul.f32 %v488, %v711
        %v756 = vmul.f32 %v488, %v713
        %v757 = vmul.f32 %v488, %v715
        %v758 = vmul.f32 %v488, %v717
        %v759 = vmul.f32 %v488, %v719
        %v760 = vmul.f32 %v488, %v721
        %v761 = vmul.f32 %v488, %v723
        %v762 = vmul.f32 %v488, %v725
        %v763 = vmul.f32 %v488, %v727
        %v764 = vmul.f32 %v488, %v729
        %v765 = vmul.f32 %v488, %v731
        %v766 = vmul.f32 %v488, %v733
        %v767 = vmul.f32 %v488, %v735
        %768 = vrot.lane.b32.xlu0 %v492, 127
        %v769 = vpop.permute.xlu0 %768
        %770 = vrot.lane.b32.xlu0 %v493, 127
        %v771 = vpop.permute.xlu0 %770
        %772 = vrot.lane.b32.xlu0 %v494, 127
        %v773 = vpop.permute.xlu0 %772
        %774 = vrot.lane.b32.xlu0 %v495, 127
        %v775 = vpop.permute.xlu0 %774
        %776 = vrot.lane.b32.xlu0 %v496, 127
        %v777 = vpop.permute.xlu0 %776
        %778 = vrot.lane.b32.xlu0 %v497, 127
        %v779 = vpop.permute.xlu0 %778
        %780 = vrot.lane.b32.xlu0 %v498, 127
        %v781 = vpop.permute.xlu0 %780
        %782 = vrot.lane.b32.xlu0 %v499, 127
        %v783 = vpop.permute.xlu0 %782
        %784 = vrot.lane.b32.xlu0 %v500, 127
        %v785 = vpop.permute.xlu0 %784
        %786 = vrot.lane.b32.xlu0 %v501, 127
        %v787 = vpop.permute.xlu0 %786
        %788 = vrot.lane.b32.xlu0 %v502, 127
        %v789 = vpop.permute.xlu0 %788
        %790 = vrot.lane.b32.xlu0 %v503, 127
        %v791 = vpop.permute.xlu0 %790
        %792 = vrot.lane.b32.xlu0 %v504, 127
        %v793 = vpop.permute.xlu0 %792
        %794 = vrot.lane.b32.xlu0 %v505, 127
        %v795 = vpop.permute.xlu0 %794
        %796 = vrot.lane.b32.xlu0 %v506, 127
        %v797 = vpop.permute.xlu0 %796
        %798 = vrot.lane.b32.xlu0 %v507, 127
        %v799 = vpop.permute.xlu0 %798
        %v816 = vmul.f32 %v491, %v769
        %v817 = vmul.f32 %v491, %v771
        %v818 = vmul.f32 %v491, %v773
        %v819 = vmul.f32 %v491, %v775
        %v820 = vmul.f32 %v491, %v777
        %v821 = vmul.f32 %v491, %v779
        %v822 = vmul.f32 %v491, %v781
        %v823 = vmul.f32 %v491, %v783
        %v824 = vmul.f32 %v491, %v785
        %v825 = vmul.f32 %v491, %v787
        %v826 = vmul.f32 %v491, %v789
        %v827 = vmul.f32 %v491, %v791
        %v828 = vmul.f32 %v491, %v793
        %v829 = vmul.f32 %v491, %v795
        %v830 = vmul.f32 %v491, %v797
        %v831 = vmul.f32 %v491, %v799
        %v832 = vmul.f32 %v492, 4.0
        %v833 = vmul.f32 %v493, 4.0
        %v834 = vmul.f32 %v494, 4.0
        %v835 = vmul.f32 %v495, 4.0
        %v836 = vmul.f32 %v496, 4.0
        %v837 = vmul.f32 %v497, 4.0
        %v838 = vmul.f32 %v498, 4.0
        %v839 = vmul.f32 %v499, 4.0
        %v840 = vmul.f32 %v500, 4.0
        %v841 = vmul.f32 %v501, 4.0
        %v842 = vmul.f32 %v502, 4.0
        %v843 = vmul.f32 %v503, 4.0
        %v844 = vmul.f32 %v504, 4.0
        %v845 = vmul.f32 %v505, 4.0
        %v846 = vmul.f32 %v506, 4.0
        %v847 = vmul.f32 %v507, 4.0
        %v848 = vsub.f32 %v832, %v622
        %v849 = vsub.f32 %v833, %v623
        %v850 = vsub.f32 %v834, %v624
        %v851 = vsub.f32 %v835, %v625
        %v852 = vsub.f32 %v836, %v626
        %v853 = vsub.f32 %v837, %v627
        %v854 = vsub.f32 %v838, %v628
        %v855 = vsub.f32 %v839, %v629
        %v856 = vsub.f32 %v840, %v630
        %v857 = vsub.f32 %v841, %v631
        %v858 = vsub.f32 %v842, %v632
        %v859 = vsub.f32 %v843, %v633
        %v860 = vsub.f32 %v844, %v634
        %v861 = vsub.f32 %v845, %v635
        %v862 = vsub.f32 %v846, %v636
        %v863 = vsub.f32 %v847, %v637
        %v864 = vsub.f32 %v848, %v688
        %v865 = vsub.f32 %v849, %v689
        %v866 = vsub.f32 %v850, %v690
        %v867 = vsub.f32 %v851, %v691
        %v868 = vsub.f32 %v852, %v692
        %v869 = vsub.f32 %v853, %v693
        %v870 = vsub.f32 %v854, %v694
        %v871 = vsub.f32 %v855, %v695
        %v872 = vsub.f32 %v856, %v696
        %v873 = vsub.f32 %v857, %v697
        %v874 = vsub.f32 %v858, %v698
        %v875 = vsub.f32 %v859, %v699
        %v876 = vsub.f32 %v860, %v700
        %v877 = vsub.f32 %v861, %v701
        %v878 = vsub.f32 %v862, %v702
        %v879 = vsub.f32 %v863, %v703
        %v880 = vsub.f32 %v864, %v752
        %v881 = vsub.f32 %v865, %v753
        %v882 = vsub.f32 %v866, %v754
        %v883 = vsub.f32 %v867, %v755
        %v884 = vsub.f32 %v868, %v756
        %v885 = vsub.f32 %v869, %v757
        %v886 = vsub.f32 %v870, %v758
        %v887 = vsub.f32 %v871, %v759
        %v888 = vsub.f32 %v872, %v760
        %v889 = vsub.f32 %v873, %v761
        %v890 = vsub.f32 %v874, %v762
        %v891 = vsub.f32 %v875, %v763
        %v892 = vsub.f32 %v876, %v764
        %v893 = vsub.f32 %v877, %v765
        %v894 = vsub.f32 %v878, %v766
        %v895 = vsub.f32 %v879, %v767
        %v896 = vsub.f32 %v880, %v816
        %v897 = vsub.f32 %v881, %v817
        %v898 = vsub.f32 %v882, %v818
        %v899 = vsub.f32 %v883, %v819
        %v900 = vsub.f32 %v884, %v820
        %v901 = vsub.f32 %v885, %v821
        %v902 = vsub.f32 %v886, %v822
        %v903 = vsub.f32 %v887, %v823
        %v904 = vsub.f32 %v888, %v824
        %v905 = vsub.f32 %v889, %v825
        %v906 = vsub.f32 %v890, %v826
        %v907 = vsub.f32 %v891, %v827
        %v908 = vsub.f32 %v892, %v828
        %v909 = vsub.f32 %v893, %v829
        %v910 = vsub.f32 %v894, %v830
        %v911 = vsub.f32 %v895, %v831
        %v912 = vmul.f32 %v896, 16384.0
        %v913 = vmul.f32 %v897, 16384.0
        %v914 = vmul.f32 %v898, 16384.0
        %v915 = vmul.f32 %v899, 16384.0
        %v916 = vmul.f32 %v900, 16384.0
        %v917 = vmul.f32 %v901, 16384.0
        %v918 = vmul.f32 %v902, 16384.0
        %v919 = vmul.f32 %v903, 16384.0
        %v920 = vmul.f32 %v904, 16384.0
        %v921 = vmul.f32 %v905, 16384.0
        %v922 = vmul.f32 %v906, 16384.0
        %v923 = vmul.f32 %v907, 16384.0
        %v924 = vmul.f32 %v908, 16384.0
        %v925 = vmul.f32 %v909, 16384.0
        %v926 = vmul.f32 %v910, 16384.0
        %v927 = vmul.f32 %v911, 16384.0
        %v928 = vmul.f32 %v524, %v492
        %v929 = vmul.f32 %v525, %v493
        %v930 = vmul.f32 %v526, %v494
        %v931 = vmul.f32 %v527, %v495
        %v932 = vmul.f32 %v528, %v496
        %v933 = vmul.f32 %v529, %v497
        %v934 = vmul.f32 %v530, %v498
        %v935 = vmul.f32 %v531, %v499
        %v936 = vmul.f32 %v532, %v500
        %v937 = vmul.f32 %v533, %v501
        %v938 = vmul.f32 %v534, %v502
        %v939 = vmul.f32 %v535, %v503
        %v940 = vmul.f32 %v536, %v504
        %v941 = vmul.f32 %v537, %v505
        %v942 = vmul.f32 %v538, %v506
        %v943 = vmul.f32 %v539, %v507
        %v944 = vmul.f32 %v540, %v508
        %v945 = vmul.f32 %v541, %v509
        %v946 = vmul.f32 %v542, %v510
        %v947 = vmul.f32 %v543, %v511
        %v948 = vmul.f32 %v544, %v512
        %v949 = vmul.f32 %v545, %v513
        %v950 = vmul.f32 %v546, %v514
        %v951 = vmul.f32 %v547, %v515
        %v952 = vmul.f32 %v548, %v516
        %v953 = vmul.f32 %v549, %v517
        %v954 = vmul.f32 %v550, %v518
        %v955 = vmul.f32 %v551, %v519
        %v956 = vmul.f32 %v552, %v520
        %v957 = vmul.f32 %v553, %v521
        %v958 = vmul.f32 %v554, %v522
        %v959 = vmul.f32 %v555, %v523
        %v960 = vsub.f32 %v928, %v944
        %v961 = vsub.f32 %v929, %v945
        %v962 = vsub.f32 %v930, %v946
        %v963 = vsub.f32 %v931, %v947
        %v964 = vsub.f32 %v932, %v948
        %v965 = vsub.f32 %v933, %v949
        %v966 = vsub.f32 %v934, %v950
        %v967 = vsub.f32 %v935, %v951
        %v968 = vsub.f32 %v936, %v952
        %v969 = vsub.f32 %v937, %v953
        %v970 = vsub.f32 %v938, %v954
        %v971 = vsub.f32 %v939, %v955
        %v972 = vsub.f32 %v940, %v956
        %v973 = vsub.f32 %v941, %v957
        %v974 = vsub.f32 %v942, %v958
        %v975 = vsub.f32 %v943, %v959
        %v976 = vsub.f32 %v912, %v960
        %v977 = vsub.f32 %v913, %v961
        %v978 = vsub.f32 %v914, %v962
        %v979 = vsub.f32 %v915, %v963
        %v980 = vsub.f32 %v916, %v964
        %v981 = vsub.f32 %v917, %v965
        %v982 = vsub.f32 %v918, %v966
        %v983 = vsub.f32 %v919, %v967
        %v984 = vsub.f32 %v920, %v968
        %v985 = vsub.f32 %v921, %v969
        %v986 = vsub.f32 %v922, %v970
        %v987 = vsub.f32 %v923, %v971
        %v988 = vsub.f32 %v924, %v972
        %v989 = vsub.f32 %v925, %v973
        %v990 = vsub.f32 %v926, %v974
        %v991 = vsub.f32 %v927, %v975
        %v993 = vrot.slane %v523, 7
        %v1010 = vrot.slane %v508, 7
        %v1011 = vrot.slane %v509, 7
        %v1012 = vsel %vm574, %v1010, %v1011
        %v1013 = vrot.slane %v510, 7
        %v1014 = vsel %vm574, %v1011, %v1013
        %v1015 = vrot.slane %v511, 7
        %v1016 = vsel %vm574, %v1013, %v1015
        %v1017 = vrot.slane %v512, 7
        %v1018 = vsel %vm574, %v1015, %v1017
        %v1019 = vrot.slane %v513, 7
        %v1020 = vsel %vm574, %v1017, %v1019
        %v1021 = vrot.slane %v514, 7
        %v1022 = vsel %vm574, %v1019, %v1021
        %v1023 = vrot.slane %v515, 7
        %v1024 = vsel %vm574, %v1021, %v1023
        %v1025 = vrot.slane %v516, 7
        %v1026 = vsel %vm574, %v1023, %v1025
        %v1027 = vrot.slane %v517, 7
        %v1028 = vsel %vm574, %v1025, %v1027
        %v1029 = vrot.slane %v518, 7
        %v1030 = vsel %vm574, %v1027, %v1029
        %v1031 = vrot.slane %v519, 7
        %v1032 = vsel %vm574, %v1029, %v1031
        %v1033 = vrot.slane %v520, 7
        %v1034 = vsel %vm574, %v1031, %v1033
        %v1035 = vrot.slane %v521, 7
        %v1036 = vsel %vm574, %v1033, %v1035
        %v1037 = vrot.slane %v522, 7
        %v1038 = vsel %vm574, %v1035, %v1037
        %v1039 = vsel %vm574, %v1037, %v993
        %v1056 = vsel %vm574, %v993, %v1010
        %v1057 = vmul.f32 %v422, %v1056
        %v1058 = vmul.f32 %v423, %v1012
        %v1059 = vmul.f32 %v424, %v1014
        %v1060 = vmul.f32 %v425, %v1016
        %v1061 = vmul.f32 %v426, %v1018
        %v1062 = vmul.f32 %v427, %v1020
        %v1063 = vmul.f32 %v428, %v1022
        %v1064 = vmul.f32 %v429, %v1024
        %v1065 = vmul.f32 %v430, %v1026
        %v1066 = vmul.f32 %v431, %v1028
        %v1067 = vmul.f32 %v432, %v1030
        %v1068 = vmul.f32 %v433, %v1032
        %v1069 = vmul.f32 %v434, %v1034
        %v1070 = vmul.f32 %v435, %v1036
        %v1071 = vmul.f32 %v436, %v1038
        %v1072 = vmul.f32 %v437, %v1039
        %v1073 = vrot.slane %v508, 1
        %v1074 = vrot.slane %v509, 1
        %v1075 = vsel %vm638, %v1073, %v1074
        %v1076 = vrot.slane %v510, 1
        %v1077 = vsel %vm638, %v1074, %v1076
        %v1078 = vrot.slane %v511, 1
        %v1079 = vsel %vm638, %v1076, %v1078
        %v1080 = vrot.slane %v512, 1
        %v1081 = vsel %vm638, %v1078, %v1080
        %v1082 = vrot.slane %v513, 1
        %v1083 = vsel %vm638, %v1080, %v1082
        %v1084 = vrot.slane %v514, 1
        %v1085 = vsel %vm638, %v1082, %v1084
        %v1086 = vrot.slane %v515, 1
        %v1087 = vsel %vm638, %v1084, %v1086
        %v1088 = vrot.slane %v516, 1
        %v1089 = vsel %vm638, %v1086, %v1088
        %v1090 = vrot.slane %v517, 1
        %v1091 = vsel %vm638, %v1088, %v1090
        %v1092 = vrot.slane %v518, 1
        %v1093 = vsel %vm638, %v1090, %v1092
        %v1094 = vrot.slane %v519, 1
        %v1095 = vsel %vm638, %v1092, %v1094
        %v1096 = vrot.slane %v520, 1
        %v1097 = vsel %vm638, %v1094, %v1096
        %v1098 = vrot.slane %v521, 1
        %v1099 = vsel %vm638, %v1096, %v1098
        %v1100 = vrot.slane %v522, 1
        %v1101 = vsel %vm638, %v1098, %v1100
        %v1102 = vrot.slane %v523, 1
        %v1103 = vsel %vm638, %v1100, %v1102
        %v1121 = vsel %vm638, %v1102, %v1073
        %v1122 = vmul.f32 %v470, %v1075
        %v1123 = vmul.f32 %v471, %v1077
        %v1124 = vmul.f32 %v472, %v1079
        %v1125 = vmul.f32 %v473, %v1081
        %v1126 = vmul.f32 %v474, %v1083
        %v1127 = vmul.f32 %v475, %v1085
        %v1128 = vmul.f32 %v476, %v1087
        %v1129 = vmul.f32 %v477, %v1089
        %v1130 = vmul.f32 %v478, %v1091
        %v1131 = vmul.f32 %v479, %v1093
        %v1132 = vmul.f32 %v480, %v1095
        %v1133 = vmul.f32 %v481, %v1097
        %v1134 = vmul.f32 %v482, %v1099
        %v1135 = vmul.f32 %v483, %v1101
        %v1136 = vmul.f32 %v484, %v1103
        %v1137 = vmul.f32 %v485, %v1121
        %1138 = vrot.lane.b32.xlu0 %v508, 1
        %v1139 = vpop.permute.xlu0 %1138
        %1140 = vrot.lane.b32.xlu0 %v509, 1
        %v1141 = vpop.permute.xlu0 %1140
        %1142 = vrot.lane.b32.xlu0 %v510, 1
        %v1143 = vpop.permute.xlu0 %1142
        %1144 = vrot.lane.b32.xlu0 %v511, 1
        %v1145 = vpop.permute.xlu0 %1144
        %1146 = vrot.lane.b32.xlu0 %v512, 1
        %v1147 = vpop.permute.xlu0 %1146
        %1148 = vrot.lane.b32.xlu0 %v513, 1
        %v1149 = vpop.permute.xlu0 %1148
        %1150 = vrot.lane.b32.xlu0 %v514, 1
        %v1151 = vpop.permute.xlu0 %1150
        %1152 = vrot.lane.b32.xlu0 %v515, 1
        %v1153 = vpop.permute.xlu0 %1152
        %1154 = vrot.lane.b32.xlu0 %v516, 1
        %v1155 = vpop.permute.xlu0 %1154
        %1156 = vrot.lane.b32.xlu0 %v517, 1
        %v1157 = vpop.permute.xlu0 %1156
        %1158 = vrot.lane.b32.xlu0 %v518, 1
        %v1159 = vpop.permute.xlu0 %1158
        %1160 = vrot.lane.b32.xlu0 %v519, 1
        %v1161 = vpop.permute.xlu0 %1160
        %1162 = vrot.lane.b32.xlu0 %v520, 1
        %v1163 = vpop.permute.xlu0 %1162
        %1164 = vrot.lane.b32.xlu0 %v521, 1
        %v1165 = vpop.permute.xlu0 %1164
        %1166 = vrot.lane.b32.xlu0 %v522, 1
        %v1167 = vpop.permute.xlu0 %1166
        %1168 = vrot.lane.b32.xlu0 %v523, 1
        %v1169 = vpop.permute.xlu0 %1168
        %v1186 = vmul.f32 %v488, %v1139
        %v1187 = vmul.f32 %v488, %v1141
        %v1188 = vmul.f32 %v488, %v1143
        %v1189 = vmul.f32 %v488, %v1145
        %v1190 = vmul.f32 %v488, %v1147
        %v1191 = vmul.f32 %v488, %v1149
        %v1192 = vmul.f32 %v488, %v1151
        %v1193 = vmul.f32 %v488, %v1153
        %v1194 = vmul.f32 %v488, %v1155
        %v1195 = vmul.f32 %v488, %v1157
        %v1196 = vmul.f32 %v488, %v1159
        %v1197 = vmul.f32 %v488, %v1161
        %v1198 = vmul.f32 %v488, %v1163
        %v1199 = vmul.f32 %v488, %v1165
        %v1200 = vmul.f32 %v488, %v1167
        %v1201 = vmul.f32 %v488, %v1169
        %1202 = vrot.lane.b32.xlu0 %v508, 127
        %v1203 = vpop.permute.xlu0 %1202
        %1204 = vrot.lane.b32.xlu0 %v509, 127
        %v1205 = vpop.permute.xlu0 %1204
        %1206 = vrot.lane.b32.xlu0 %v510, 127
        %v1207 = vpop.permute.xlu0 %1206
        %1208 = vrot.lane.b32.xlu0 %v511, 127
        %v1209 = vpop.permute.xlu0 %1208
        %1210 = vrot.lane.b32.xlu0 %v512, 127
        %v1211 = vpop.permute.xlu0 %1210
        %1212 = vrot.lane.b32.xlu0 %v513, 127
        %v1213 = vpop.permute.xlu0 %1212
        %1214 = vrot.lane.b32.xlu0 %v514, 127
        %v1215 = vpop.permute.xlu0 %1214
        %1216 = vrot.lane.b32.xlu0 %v515, 127
        %v1217 = vpop.permute.xlu0 %1216
        %1218 = vrot.lane.b32.xlu0 %v516, 127
        %v1219 = vpop.permute.xlu0 %1218
        %1220 = vrot.lane.b32.xlu0 %v517, 127
        %v1221 = vpop.permute.xlu0 %1220
        %1222 = vrot.lane.b32.xlu0 %v518, 127
        %v1223 = vpop.permute.xlu0 %1222
        %1224 = vrot.lane.b32.xlu0 %v519, 127
        %v1225 = vpop.permute.xlu0 %1224
        %1226 = vrot.lane.b32.xlu0 %v520, 127
        %v1227 = vpop.permute.xlu0 %1226
        %1228 = vrot.lane.b32.xlu0 %v521, 127
        %v1229 = vpop.permute.xlu0 %1228
        %1230 = vrot.lane.b32.xlu0 %v522, 127
        %v1231 = vpop.permute.xlu0 %1230
        %1232 = vrot.lane.b32.xlu0 %v523, 127
        %v1233 = vpop.permute.xlu0 %1232
        %v1250 = vmul.f32 %v491, %v1203
        %v1251 = vmul.f32 %v491, %v1205
        %v1252 = vmul.f32 %v491, %v1207
        %v1253 = vmul.f32 %v491, %v1209
        %v1254 = vmul.f32 %v491, %v1211
        %v1255 = vmul.f32 %v491, %v1213
        %v1256 = vmul.f32 %v491, %v1215
        %v1257 = vmul.f32 %v491, %v1217
        %v1258 = vmul.f32 %v491, %v1219
        %v1259 = vmul.f32 %v491, %v1221
        %v1260 = vmul.f32 %v491, %v1223
        %v1261 = vmul.f32 %v491, %v1225
        %v1262 = vmul.f32 %v491, %v1227
        %v1263 = vmul.f32 %v491, %v1229
        %v1264 = vmul.f32 %v491, %v1231
        %v1265 = vmul.f32 %v491, %v1233
        %v1266 = vmul.f32 %v508, 4.0
        %v1267 = vmul.f32 %v509, 4.0
        %v1268 = vmul.f32 %v510, 4.0
        %v1269 = vmul.f32 %v511, 4.0
        %v1270 = vmul.f32 %v512, 4.0
        %v1271 = vmul.f32 %v513, 4.0
        %v1272 = vmul.f32 %v514, 4.0
        %v1273 = vmul.f32 %v515, 4.0
        %v1274 = vmul.f32 %v516, 4.0
        %v1275 = vmul.f32 %v517, 4.0
        %v1276 = vmul.f32 %v518, 4.0
        %v1277 = vmul.f32 %v519, 4.0
        %v1278 = vmul.f32 %v520, 4.0
        %v1279 = vmul.f32 %v521, 4.0
        %v1280 = vmul.f32 %v522, 4.0
        %v1281 = vmul.f32 %v523, 4.0
        %v1282 = vsub.f32 %v1266, %v1057
        %v1283 = vsub.f32 %v1267, %v1058
        %v1284 = vsub.f32 %v1268, %v1059
        %v1285 = vsub.f32 %v1269, %v1060
        %v1286 = vsub.f32 %v1270, %v1061
        %v1287 = vsub.f32 %v1271, %v1062
        %v1288 = vsub.f32 %v1272, %v1063
        %v1289 = vsub.f32 %v1273, %v1064
        %v1290 = vsub.f32 %v1274, %v1065
        %v1291 = vsub.f32 %v1275, %v1066
        %v1292 = vsub.f32 %v1276, %v1067
        %v1293 = vsub.f32 %v1277, %v1068
        %v1294 = vsub.f32 %v1278, %v1069
        %v1295 = vsub.f32 %v1279, %v1070
        %v1296 = vsub.f32 %v1280, %v1071
        %v1297 = vsub.f32 %v1281, %v1072
        %v1298 = vsub.f32 %v1282, %v1122
        %v1299 = vsub.f32 %v1283, %v1123
        %v1300 = vsub.f32 %v1284, %v1124
        %v1301 = vsub.f32 %v1285, %v1125
        %v1302 = vsub.f32 %v1286, %v1126
        %v1303 = vsub.f32 %v1287, %v1127
        %v1304 = vsub.f32 %v1288, %v1128
        %v1305 = vsub.f32 %v1289, %v1129
        %v1306 = vsub.f32 %v1290, %v1130
        %v1307 = vsub.f32 %v1291, %v1131
        %v1308 = vsub.f32 %v1292, %v1132
        %v1309 = vsub.f32 %v1293, %v1133
        %v1310 = vsub.f32 %v1294, %v1134
        %v1311 = vsub.f32 %v1295, %v1135
        %v1312 = vsub.f32 %v1296, %v1136
        %v1313 = vsub.f32 %v1297, %v1137
        %v1314 = vsub.f32 %v1298, %v1186
        %v1315 = vsub.f32 %v1299, %v1187
        %v1316 = vsub.f32 %v1300, %v1188
        %v1317 = vsub.f32 %v1301, %v1189
        %v1318 = vsub.f32 %v1302, %v1190
        %v1319 = vsub.f32 %v1303, %v1191
        %v1320 = vsub.f32 %v1304, %v1192
        %v1321 = vsub.f32 %v1305, %v1193
        %v1322 = vsub.f32 %v1306, %v1194
        %v1323 = vsub.f32 %v1307, %v1195
        %v1324 = vsub.f32 %v1308, %v1196
        %v1325 = vsub.f32 %v1309, %v1197
        %v1326 = vsub.f32 %v1310, %v1198
        %v1327 = vsub.f32 %v1311, %v1199
        %v1328 = vsub.f32 %v1312, %v1200
        %v1329 = vsub.f32 %v1313, %v1201
        %v1330 = vsub.f32 %v1314, %v1250
        %v1331 = vsub.f32 %v1315, %v1251
        %v1332 = vsub.f32 %v1316, %v1252
        %v1333 = vsub.f32 %v1317, %v1253
        %v1334 = vsub.f32 %v1318, %v1254
        %v1335 = vsub.f32 %v1319, %v1255
        %v1336 = vsub.f32 %v1320, %v1256
        %v1337 = vsub.f32 %v1321, %v1257
        %v1338 = vsub.f32 %v1322, %v1258
        %v1339 = vsub.f32 %v1323, %v1259
        %v1340 = vsub.f32 %v1324, %v1260
        %v1341 = vsub.f32 %v1325, %v1261
        %v1342 = vsub.f32 %v1326, %v1262
        %v1343 = vsub.f32 %v1327, %v1263
        %v1344 = vsub.f32 %v1328, %v1264
        %v1345 = vsub.f32 %v1329, %v1265
        %v1346 = vmul.f32 %v1330, 16384.0
        %v1347 = vmul.f32 %v1331, 16384.0
        %v1348 = vmul.f32 %v1332, 16384.0
        %v1349 = vmul.f32 %v1333, 16384.0
        %v1350 = vmul.f32 %v1334, 16384.0
        %v1351 = vmul.f32 %v1335, 16384.0
        %v1352 = vmul.f32 %v1336, 16384.0
        %v1353 = vmul.f32 %v1337, 16384.0
        %v1354 = vmul.f32 %v1338, 16384.0
        %v1355 = vmul.f32 %v1339, 16384.0
        %v1356 = vmul.f32 %v1340, 16384.0
        %v1357 = vmul.f32 %v1341, 16384.0
        %v1358 = vmul.f32 %v1342, 16384.0
        %v1359 = vmul.f32 %v1343, 16384.0
        %v1360 = vmul.f32 %v1344, 16384.0
        %v1361 = vmul.f32 %v1345, 16384.0
        %v1362 = vmul.f32 %v524, %v508
        %v1363 = vmul.f32 %v525, %v509
        %v1364 = vmul.f32 %v526, %v510
        %v1365 = vmul.f32 %v527, %v511
        %v1366 = vmul.f32 %v528, %v512
        %v1367 = vmul.f32 %v529, %v513
        %v1368 = vmul.f32 %v530, %v514
        %v1369 = vmul.f32 %v531, %v515
        %v1370 = vmul.f32 %v532, %v516
        %v1371 = vmul.f32 %v533, %v517
        %v1372 = vmul.f32 %v534, %v518
        %v1373 = vmul.f32 %v535, %v519
        %v1374 = vmul.f32 %v536, %v520
        %v1375 = vmul.f32 %v537, %v521
        %v1376 = vmul.f32 %v538, %v522
        %v1377 = vmul.f32 %v539, %v523
        %v1378 = vmul.f32 %v540, %v492
        %v1379 = vmul.f32 %v541, %v493
        %v1380 = vmul.f32 %v542, %v494
        %v1381 = vmul.f32 %v543, %v495
        %v1382 = vmul.f32 %v544, %v496
        %v1383 = vmul.f32 %v545, %v497
        %v1384 = vmul.f32 %v546, %v498
        %v1385 = vmul.f32 %v547, %v499
        %v1386 = vmul.f32 %v548, %v500
        %v1387 = vmul.f32 %v549, %v501
        %v1388 = vmul.f32 %v550, %v502
        %v1389 = vmul.f32 %v551, %v503
        %v1390 = vmul.f32 %v552, %v504
        %v1391 = vmul.f32 %v553, %v505
        %v1392 = vmul.f32 %v554, %v506
        %v1393 = vmul.f32 %v555, %v507
        %v1394 = vadd.f32 %v1362, %v1378
        %v1395 = vadd.f32 %v1363, %v1379
        %v1396 = vadd.f32 %v1364, %v1380
        %v1397 = vadd.f32 %v1365, %v1381
        %v1398 = vadd.f32 %v1366, %v1382
        %v1399 = vadd.f32 %v1367, %v1383
        %v1400 = vadd.f32 %v1368, %v1384
        %v1401 = vadd.f32 %v1369, %v1385
        %v1402 = vadd.f32 %v1370, %v1386
        %v1403 = vadd.f32 %v1371, %v1387
        %v1404 = vadd.f32 %v1372, %v1388
        %v1405 = vadd.f32 %v1373, %v1389
        %v1406 = vadd.f32 %v1374, %v1390
        %v1407 = vadd.f32 %v1375, %v1391
        %v1408 = vadd.f32 %v1376, %v1392
        %v1409 = vadd.f32 %v1377, %v1393
        %v1410 = vsub.f32 %v1346, %v1394
        %v1411 = vsub.f32 %v1347, %v1395
        %v1412 = vsub.f32 %v1348, %v1396
        %v1413 = vsub.f32 %v1349, %v1397
        %v1414 = vsub.f32 %v1350, %v1398
        %v1415 = vsub.f32 %v1351, %v1399
        %v1416 = vsub.f32 %v1352, %v1400
        %v1417 = vsub.f32 %v1353, %v1401
        %v1418 = vsub.f32 %v1354, %v1402
        %v1419 = vsub.f32 %v1355, %v1403
        %v1420 = vsub.f32 %v1356, %v1404
        %v1421 = vsub.f32 %v1357, %v1405
        %v1422 = vsub.f32 %v1358, %v1406
        %v1423 = vsub.f32 %v1359, %v1407
        %v1424 = vsub.f32 %v1360, %v1408
        %v1425 = vsub.f32 %v1361, %v1409
        %1426 = vst [vmem:[%s363] sm:$0xff] %v976
        %1427 = vst [vmem:[%s363 + $0x8] sm:$0xff] %v977
        %1428 = vst [vmem:[%s363 + $0x10] sm:$0xff] %v978
        %1429 = vst [vmem:[%s363 + $0x18] sm:$0xff] %v979
        %1430 = vst [vmem:[%s363 + $0x20] sm:$0xff] %v980
        %1431 = vst [vmem:[%s363 + $0x28] sm:$0xff] %v981
        %1432 = vst [vmem:[%s363 + $0x30] sm:$0xff] %v982
        %1433 = vst [vmem:[%s363 + $0x38] sm:$0xff] %v983
        %1434 = vst [vmem:[%s363 + $0x40] sm:$0xff] %v984
        %1435 = vst [vmem:[%s363 + $0x48] sm:$0xff] %v985
        %1436 = vst [vmem:[%s363 + $0x50] sm:$0xff] %v986
        %1437 = vst [vmem:[%s363 + $0x58] sm:$0xff] %v987
        %1438 = vst [vmem:[%s363 + $0x60] sm:$0xff] %v988
        %1439 = vst [vmem:[%s363 + $0x68] sm:$0xff] %v989
        %1440 = vst [vmem:[%s363 + $0x70] sm:$0xff] %v990
        %1441 = vst [vmem:[%s363 + $0x78] sm:$0xff] %v991
        %1442 = vst [vmem:[%s370] sm:$0xff] %v1410
        %1443 = vst [vmem:[%s370 + $0x8] sm:$0xff] %v1411
        %1444 = vst [vmem:[%s370 + $0x10] sm:$0xff] %v1412
        %1445 = vst [vmem:[%s370 + $0x18] sm:$0xff] %v1413
        %1446 = vst [vmem:[%s370 + $0x20] sm:$0xff] %v1414
        %1447 = vst [vmem:[%s370 + $0x28] sm:$0xff] %v1415
        %1448 = vst [vmem:[%s370 + $0x30] sm:$0xff] %v1416
        %1449 = vst [vmem:[%s370 + $0x38] sm:$0xff] %v1417
        %1450 = vst [vmem:[%s370 + $0x40] sm:$0xff] %v1418
        %1451 = vst [vmem:[%s370 + $0x48] sm:$0xff] %v1419
        %1452 = vst [vmem:[%s370 + $0x50] sm:$0xff] %v1420
        %1453 = vst [vmem:[%s370 + $0x58] sm:$0xff] %v1421
        %1454 = vst [vmem:[%s370 + $0x60] sm:$0xff] %v1422
        %1455 = vst [vmem:[%s370 + $0x68] sm:$0xff] %v1423
        %1456 = vst [vmem:[%s370 + $0x70] sm:$0xff] %v1424
        %1457 = vst [vmem:[%s370 + $0x78] sm:$0xff] %v1425
        %s1458 = sand.u32 %s144, 1
        %s1459 = scalar_lea.sflag [#allocation4], %s1458
        %s1460 = sand.u32 %s144, 1
        %s1461 = smul.addr %s1460, 128
        %s1462 = scalar_lea.vmem [#allocation10], %s1461
        %s1463 = sand.u32 %s170, 1
        %s1464 = scalar_lea.sflag [#allocation12], %s1463
        %s1465 = sand.u32 %s170, 1
        %s1466 = smul.addr %s1465, 128
        %s1467 = scalar_lea.vmem [#allocation11], %s1466
        // Predicated region
        $region53: #{tpu_custom_call.1} parent=35 // pred_check
          %p1468 = pneg %p154
        $region54: #{tpu_custom_call.1} parent=35 // pred_check_branch
          %1470 = sbr.rel (%p1468) target = $region56
        $region55: #{tpu_custom_call.1} parent=35 // pred_region
          %s1472 = ssub.s32 2048, 2048
          %1473 = vsyncadd %s1459, %s1472
          %s1474 = smul.addr %s32, 16
          %s1475 = smul.addr %s1474, 128
          %s1476 = scalar_lea.hbm %s4, %s1475
          %s1477 = sshll.u32 %s1462, 4
          %s1478 = int_to_ptr.vmem [resolvable:$true] %s1477
          %1483 = dma.vmem_to_hbm [thread:$0]  %s1478, 2048, %s1476, %s1459, 128, 128, 8
        $region56: #{tpu_custom_call.1} parent=35 // pred_fallthru
          _
        // Predicated region
        $region57: #{tpu_custom_call.1} parent=35 // pred_check
          %p1484 = pneg %p180
        $region58: #{tpu_custom_call.1} parent=35 // pred_check_branch
          %1486 = sbr.rel (%p1484) target = $region60
        $region59: #{tpu_custom_call.1} parent=35 // pred_region
          %s1488 = ssub.s32 2048, 2048
          %1489 = vsyncadd %s1464, %s1488
          %s1490 = smul.addr %s32, 16
          %s1491 = smul.addr %s1490, 128
          %s1492 = scalar_lea.hbm %s5, %s1491
          %s1493 = sshll.u32 %s1467, 4
          %s1494 = int_to_ptr.vmem [resolvable:$true] %s1493
          %1499 = dma.vmem_to_hbm [thread:$0]  %s1494, 2048, %s1492, %s1464, 128, 128, 8
        $region60: #{tpu_custom_call.1} parent=35 // pred_fallthru
          _
      $region36: #{tpu_custom_call.1} parent=5 // pred_fallthru
        _
      %p1500 = scmp.le.s32.totalorder 2, %s27
      // Predicated region
      $region61: #{tpu_custom_call.1} parent=5 // pred_check
        %p1501 = pneg %p1500
      $region62: #{tpu_custom_call.1} parent=5 // pred_check_branch
        %1503 = sbr.rel (%p1501) target = $region64
      $region63: #{tpu_custom_call.1} parent=5 // pred_region
        %s1504 = ssub.s32 %s27, 2
        // Predicated region
        $region65: #{tpu_custom_call.1} parent=63 // pred_check
          %p1505 = pneg %p160
        $region66: #{tpu_custom_call.1} parent=63 // pred_check_branch
          %1507 = sbr.rel (%p1505) target = $region68
        $region67: #{tpu_custom_call.1} parent=63 // pred_region
          %s1508 = sand.u32 %s145, 1
          %s1509 = scalar_lea.sflag [#allocation4], %s1508
          %s1510 = sand.u32 %s145, 1
          %s1511 = smul.addr %s1510, 128
          %s1512 = scalar_lea.vmem [#allocation10], %s1511
          %1513 = dma.done %s1509, 2048
        $region68: #{tpu_custom_call.1} parent=63 // pred_fallthru
          _
        // Predicated region
        $region69: #{tpu_custom_call.1} parent=63 // pred_check
          %p1514 = pneg %p186
        $region70: #{tpu_custom_call.1} parent=63 // pred_check_branch
          %1516 = sbr.rel (%p1514) target = $region72
        $region71: #{tpu_custom_call.1} parent=63 // pred_region
          %s1517 = sand.u32 %s171, 1
          %s1518 = scalar_lea.sflag [#allocation12], %s1517
          %s1519 = sand.u32 %s171, 1
          %s1520 = smul.addr %s1519, 128
          %s1521 = scalar_lea.vmem [#allocation11], %s1520
          %1522 = dma.done %s1518, 2048
        $region72: #{tpu_custom_call.1} parent=63 // pred_fallthru
          _
      $region64: #{tpu_custom_call.1} parent=5 // pred_fallthru
        _
    $region6: #{tpu_custom_call.1} parent=1 // loop_footer
      %s31 = sadd.s32 1, %s27
    $region7: #{tpu_custom_call.1} parent=1 // loop_footer_branch
      %26 = sbr.rel target = $region3
    $region8: #{tpu_custom_call.1} parent=1 // loop_exit
      _
    %1523 = vsyncpa [#allocation3], 1
    %s1524 = scalar_lea.sflag [#allocation3], 1
    %1525 = vsyncpa %s1524, 1
    %1526 = vsyncpa [#allocation6], 1
    %s1527 = scalar_lea.sflag [#allocation6], 1
    %1528 = vsyncpa %s1527, 1
    %1529 = vsyncpa [#allocation9], 1
    %s1530 = scalar_lea.sflag [#allocation9], 1
    %1531 = vsyncpa %s1530, 1
    %1532 = vsyncpa [#allocation4], 1
    %s1533 = scalar_lea.sflag [#allocation4], 1
    %1534 = vsyncpa %s1533, 1
    %1535 = vsyncpa [#allocation12], 1
    %s1536 = scalar_lea.sflag [#allocation12], 1
    %1537 = vsyncpa %s1536, 1

</llo_original>
